<compile_context>
chip_gen: v7x
topology: tpu7x:2x2x1
jax: 0.10.0
libtpu: 0.0.40
codegen_flags: <defaults>
</compile_context>

<pallas_src>
import functools

import jax
import jax.numpy as jnp
from jax import lax
from jax.experimental import pallas as pl
from jax.experimental.pallas import tpu as pltpu


def _round_up(n, m):
    return (n + m - 1) // m * m


# ---------------------------------------------------------------------------
# Fused Pallas kernel: whole TCN forward for one (batch, time-tile) grid cell.
# ---------------------------------------------------------------------------
def _tcn_fused_kernel(halo_ref, body_ref, wpack_ref, o_ref, *,
                      ksize, halo, t_tile, blocks, head):
    n_cols = halo + t_tile
    g0 = pl.program_id(1) * t_tile - halo        # global time of buffer col 0

    # (C, halo + t_tile) activation slab: channels on sublanes, time on lanes.
    # halo is 128 so the concat boundary is lane-aligned.
    x = jnp.concatenate([halo_ref[0], body_ref[0]], axis=1)

    # 0/1 validity per buffer column (global time >= 0).  Built ONCE per grid
    # step; for every tile but the first it is all-ones, so the per-layer
    # masking below degenerates to a cheap broadcast multiply (<<1% of the
    # MXU work) instead of the previous per-layer iota+compare+select passes.
    col = lax.broadcasted_iota(jnp.int32, (1, n_cols), 1)
    valid = (col + g0 >= 0).astype(jnp.float32)

    def wb(band):
        # Static slice of the packed weight slab: weight (O, width), bias (O, 1).
        r0, o, w = band
        return (wpack_ref[r0:r0 + o, 0:w],
                wpack_ref[r0:r0 + o, 127:128])

    def causal_conv(h, band, d):
        # K dilated taps fused into ONE MXU matmul: the K lane-shifted slices
        # of h are stacked along the channel (contraction) axis -> (K*Cin, T'),
        # and the weight was pre-reshaped to (Cout, K*Cin).  Output is
        # (K-1)*d columns shorter (the halo absorbs the shrink == "chomp").
        W, b = wb(band)
        n_out = h.shape[1] - (ksize - 1) * d
        taps = jnp.concatenate(
            [h[:, j * d: j * d + n_out] for j in range(ksize)], axis=0)
        return jnp.dot(W, taps, preferred_element_type=jnp.float32) + b

    h, off = x, 0
    n_blocks = len(blocks)
    for bi, (d, c1, c2, ds) in enumerate(blocks):
        # conv1 -> chomp -> relu   (dropout == identity in eval)
        o1 = jnp.maximum(causal_conv(h, c1, d), 0.0)
        off1 = off + (ksize - 1) * d
        # emulate conv2's own zero padding for (recomputed) t<0 activations
        o1 = o1 * valid[:, off1:off1 + o1.shape[1]]
        # conv2 -> chomp -> relu
        o2 = jnp.maximum(causal_conv(o1, c2, d), 0.0)
        off2 = off1 + (ksize - 1) * d
        # residual (1x1 downsample when channel counts differ)
        res_in = h[:, 2 * (ksize - 1) * d:]
        if ds is None:
            res = res_in
        else:
            wd, bd = wb(ds)
            res = jnp.dot(wd, res_in, preferred_element_type=jnp.float32) + bd
        h = o2 + res
        if bi + 1 < n_blocks:
            # emulate next block's conv1 zero padding; the final block's halo
            # columns are dropped below, so its mask is provably unused.
            h = h * valid[:, off2:off2 + h.shape[1]]
        off = off2

    # Keep exactly the columns for global times [t*T, (t+1)*T), then apply the
    # fused block-diagonal 1x1 head as one (3, Ctot) x (Ctot, T) matmul so the
    # HBM store is lane-dense in the PyTorch (B, 3, L) layout.
    h = h[:, halo - off:]
    wh, bh = wb(head)
    out = jnp.dot(wh, h, preferred_element_type=jnp.float32) + bh
    o_ref[0] = out.astype(o_ref.dtype)


# ---------------------------------------------------------------------------
# Parameter packing: everything into ONE (R, 128) f32 slab + static metadata.
# ---------------------------------------------------------------------------
def _pack_params(params, c_in_pad, ksize):
    bands = []
    r = 0

    def add(W, b):
        nonlocal r
        O, width = W.shape
        assert width <= 126, width
        rows = _round_up(O, 8)
        band = jnp.zeros((rows, 128), jnp.float32)
        band = band.at[:O, :width].set(W.astype(jnp.float32))
        band = band.at[:O, 127].set(b.astype(jnp.float32))   # bias in last lane
        bands.append(band)
        meta = (r, O, width)
        r += rows
        return meta

    def conv_taps(w, in_pad):         # (O, I, K) -> (O, K*in_pad), tap-major
        O, I, K = w.shape
        wt = jnp.transpose(w, (0, 2, 1))                       # (O, K, I)
        wt = jnp.pad(wt, ((0, 0), (0, 0), (0, in_pad - I)))
        return wt.reshape(O, K * in_pad)

    blocks_meta = []
    in_pad = c_in_pad
    for i, blk in enumerate(params["blocks"]):
        out_ch = blk["w1"].shape[0]
        d = 2 ** i
        c1 = add(conv_taps(blk["w1"], in_pad), blk["b1"])
        c2 = add(conv_taps(blk["w2"], out_ch), blk["b2"])
        if blk["wd"] is None:
            ds = None
        else:
            wd = jnp.pad(blk["wd"][:, :, 0],
                         ((0, 0), (0, in_pad - blk["wd"].shape[1])))
            ds = add(wd, blk["bd"])
        blocks_meta.append((d, c1, c2, ds))
        in_pad = out_ch

    head_meta = add(params["w_head"][:, :, 0], params["b_head"])
    wpack = jnp.concatenate(bands, axis=0)
    return wpack, tuple(blocks_meta), head_meta


# ---------------------------------------------------------------------------
# TemporalConvNet forward (single fused pallas_call)
# ---------------------------------------------------------------------------
def tcn_forward(x_ncl, params, kernel_size=3, t_tile=None):
    B, c_in, L = x_ncl.shape
    n_blocks = len(params["blocks"])
    dilations = tuple(2 ** i for i in range(n_blocks))
    shrink = sum(2 * (kernel_size - 1) * d for d in dilations)   # receptive field - 1
    halo = _round_up(max(shrink, 1), 128)                        # lane-aligned context
    assert halo >= shrink, (halo, shrink)

    if t_tile is None:
        # Big tiles amortize the ~0.35us/step cost and shrink the halo
        # recompute fraction; intermediates stay tiny (<=24 channels of f32),
        # so 8192 columns is well under the scoped-VMEM limit on v5e/v6e/v7x.
        t_tile = min(8192, _round_up(L, 128))
        # Keep >= ~8 grid cells so both v7x TensorCores get several steps.
        while t_tile > 1024 and B * ((L + t_tile - 1) // t_tile) < 8:
            t_tile //= 2
    t_tile = _round_up(max(t_tile, halo), halo)
    assert t_tile % halo == 0, (t_tile, halo)     # same-array halo spec needs halo | t_tile

    n_tiles = pl.cdiv(L, t_tile)
    l_pad = n_tiles * t_tile
    c_in_pad = _round_up(c_in, 8)

    # ONE padded copy of the input in the PyTorch (B, C, L) layout.
    #  * left pad of t_tile zeros = causal zero-context for tile 0 AND makes
    #    both the body window and the halo window block-aligned in the SAME
    #    array (no transpose pass, no separate halo-slab gather).
    #  * channel pad to a sublane multiple keeps every concat/matmul aligned.
    x_pad = jnp.pad(x_ncl.astype(jnp.float32),
                    ((0, 0), (0, c_in_pad - c_in), (t_tile, l_pad - L)))

    wpack, blocks_meta, head_meta = _pack_params(params, c_in_pad, kernel_size)
    n_out = head_meta[1]
    tb = t_tile // halo

    in_specs = [
        # halo window: global times [t*T - halo, t*T)     (block size = halo)
        pl.BlockSpec((1, c_in_pad, halo), lambda b, t: (b, 0, (t + 1) * tb - 1)),
        # body window: global times [t*T, (t+1)*T)        (block size = t_tile)
        pl.BlockSpec((1, c_in_pad, t_tile), lambda b, t: (b, 0, t + 1)),
        # all weights/biases: one VMEM-resident slab, constant index map
        pl.BlockSpec(wpack.shape, lambda b, t: (0, 0)),
    ]

    out = pl.pallas_call(
        functools.partial(_tcn_fused_kernel, ksize=kernel_size, halo=halo,
                          t_tile=t_tile, blocks=blocks_meta, head=head_meta),
        out_shape=jax.ShapeDtypeStruct((B, n_out, l_pad), jnp.float32),
        grid=(B, n_tiles),
        in_specs=in_specs,
        out_specs=pl.BlockSpec((1, n_out, t_tile), lambda b, t: (b, 0, t)),
        compiler_params=pltpu.CompilerParams(
            dimension_semantics=("parallel", "parallel"),
            vmem_limit_bytes=48 * 1024 * 1024),
    )(x_pad, x_pad, wpack)

    return out[:, :, :L]


# ---------------------------------------------------------------------------
# Deterministic synthetic parameters (init_weights(): N(0, 0.01) conv weights)
# ---------------------------------------------------------------------------
def make_params(key, num_inputs, num_channels, kernel_size):
    ks = iter(jax.random.split(key, 6 * len(num_channels) + 12))
    blocks = []
    in_ch = num_inputs
    for out_ch in num_channels:
        w1 = 0.01 * jax.random.normal(next(ks), (out_ch, in_ch, kernel_size), jnp.float32)
        b1 = 0.05 * jax.random.normal(next(ks), (out_ch,), jnp.float32)
        w2 = 0.01 * jax.random.normal(next(ks), (out_ch, out_ch, kernel_size), jnp.float32)
        b2 = 0.05 * jax.random.normal(next(ks), (out_ch,), jnp.float32)
        if in_ch != out_ch:
            wd = 0.01 * jax.random.normal(next(ks), (out_ch, in_ch, 1), jnp.float32)
            bd = 0.05 * jax.random.normal(next(ks), (out_ch,), jnp.float32)
        else:
            wd, bd = None, None
        blocks.append(dict(w1=w1, b1=b1, w2=w2, b2=b2, wd=wd, bd=bd))
        in_ch = out_ch

    c0, c1, c2 = num_channels
    w_low = 0.1 * jax.random.normal(next(ks), (1, c0, 1), jnp.float32)
    b_low = 0.05 * jax.random.normal(next(ks), (1,), jnp.float32)
    w_med = 0.1 * jax.random.normal(next(ks), (1, c1 - c0, 1), jnp.float32)
    b_med = 0.05 * jax.random.normal(next(ks), (1,), jnp.float32)
    w_high = 0.1 * jax.random.normal(next(ks), (1, c2 - c1, 1), jnp.float32)
    b_high = 0.05 * jax.random.normal(next(ks), (1,), jnp.float32)

    # fused block-diagonal head (3 out channels over Ctot input channels)
    w_head = jnp.zeros((3, c2, 1), jnp.float32)
    w_head = w_head.at[0, 0:c0, 0].set(w_low[0, :, 0])
    w_head = w_head.at[1, c0:c1, 0].set(w_med[0, :, 0])
    w_head = w_head.at[2, c1:c2, 0].set(w_high[0, :, 0])
    b_head = jnp.concatenate([b_low, b_med, b_high])

    return dict(blocks=blocks,
                w_low=w_low, b_low=b_low, w_med=w_med, b_med=b_med,
                w_high=w_high, b_high=b_high,
                w_head=w_head, b_head=b_head)


# ---------------------------------------------------------------------------
# Pure-JAX reference (mirrors the PyTorch module, for correctness check)
# ---------------------------------------------------------------------------
def _ref_conv1d(x, w, b, dilation, padding):
    y = lax.conv_general_dilated(x, w, window_strides=(1,),
                                 padding=[(padding, padding)],
                                 rhs_dilation=(dilation,),
                                 dimension_numbers=("NCH", "OIH", "NCH"))
    return y + b[None, :, None]


def ref_forward(x, params, kernel_size=3):
    h = x.astype(jnp.float32)
    L = x.shape[2]
    for i, blk in enumerate(params["blocks"]):
        d = 2 ** i
        p = (kernel_size - 1) * d
        o = _ref_conv1d(h, blk["w1"], blk["b1"], d, p)[:, :, :L]   # chomp1
        o = jnp.maximum(o, 0.0)                                    # relu1
        o = _ref_conv1d(o, blk["w2"], blk["b2"], d, p)[:, :, :L]   # chomp2
        o = jnp.maximum(o, 0.0)                                    # relu2
        res = h if blk["wd"] is None else _ref_conv1d(h, blk["wd"], blk["bd"], 1, 0)
        h = o + res
    low = _ref_conv1d(h[:, :8, :], params["w_low"], params["b_low"], 1, 0)
    med = _ref_conv1d(h[:, 8:16, :], params["w_med"], params["b_med"], 1, 0)
    high = _ref_conv1d(h[:, 16:, :], params["w_high"], params["b_high"], 1, 0)
    return jnp.concatenate([low, med, high], axis=1)


# ---------------------------------------------------------------------------
if __name__ == "__main__":
    key = jax.random.PRNGKey(0)
    kx, kp, kx2 = jax.random.split(key, 3)

    B, C_IN, L = 2, 4, 16
    NUM_CHANNELS = [8, 16, 24]     # implied by the :8 / 8:16 / 16: head slices
    KERNEL_SIZE = 3

    params = make_params(kp, C_IN, NUM_CHANNELS, KERNEL_SIZE)

    # Small demo shape (single time tile; exercises the t<0 causal masking).
    x = jax.random.normal(kx, (B, C_IN, L), jnp.float32)
    out = jax.jit(lambda xx: tcn_forward(xx, params, KERNEL_SIZE))(x)
    out = jax.block_until_ready(out)
    ref = ref_forward(x, params, KERNEL_SIZE)
    assert out.shape == (B, 3, L), out.shape
    err = float(jnp.max(jnp.abs(out - ref)))
    assert err < 1e-4, f"single-tile mismatch vs reference: {err}"

    # Multi-tile path: forces a 128-column tile so halos carry real history
    # across tile boundaries (validates the same-array halo/recompute scheme
    # and that the t<0 mask only affects tile 0).
    L2 = 300
    x2 = jax.random.normal(kx2, (B, C_IN, L2), jnp.float32)
    out2 = jax.jit(lambda xx: tcn_forward(xx, params, KERNEL_SIZE, t_tile=128))(x2)
    out2 = jax.block_until_ready(out2)
    ref2 = ref_forward(x2, params, KERNEL_SIZE)
    err2 = float(jnp.max(jnp.abs(out2 - ref2)))
    assert err2 < 1e-4, f"multi-tile mismatch vs reference: {err2}"

    print("KERNEL_OK")
</pallas_src>

<mosaic_0001>
module attributes {stable_mosaic.version = 11 : i64} {
  func.func @_tcn_fused_kernel(%arg0: i32, %arg1: i32, %arg2: memref<1x8x128xf32, #tpu.memory_space<vmem>>, %arg3: memref<1x8x128xf32, #tpu.memory_space<vmem>>, %arg4: memref<152x128xf32, #tpu.memory_space<vmem>>, %arg5: memref<1x3x128xf32, #tpu.memory_space<vmem>>) attributes {dimension_semantics = [#tpu.dimension_semantics<parallel>, #tpu.dimension_semantics<parallel>], iteration_bounds = array<i64: 2, 1>, scalar_prefetch = 0 : i64, scratch_operands = 0 : i64, tpu.core_type = #tpu.core_type<tc>, window_params = [{transform_indices = @transform_0, window_bounds = array<i64: 1, 8, 128>}, {transform_indices = @transform_1, window_bounds = array<i64: 1, 8, 128>}, {pipeline_mode = #tpu.pipeline_mode<synchronous>, transform_indices = @transform_2, window_bounds = array<i64: 152, 128>}, {transform_indices = @transform_3, window_bounds = array<i64: 1, 3, 128>}]} {
    %c128_i32 = arith.constant 128 : i32
    %0 = arith.muli %arg1, %c128_i32 : i32
    %c128_i32_0 = arith.constant 128 : i32
    %1 = arith.subi %0, %c128_i32_0 : i32
    %c0 = arith.constant 0 : index
    %c0_1 = arith.constant 0 : index
    %c0_2 = arith.constant 0 : index
    %2 = vector.load %arg2[%c0, %c0_1, %c0_2] : memref<1x8x128xf32, #tpu.memory_space<vmem>>, vector<1x8x128xf32>
    %3 = vector.shape_cast %2 : vector<1x8x128xf32> to vector<8x128xf32>
    %c0_3 = arith.constant 0 : index
    %c0_4 = arith.constant 0 : index
    %c0_5 = arith.constant 0 : index
    %4 = vector.load %arg3[%c0_3, %c0_4, %c0_5] : memref<1x8x128xf32, #tpu.memory_space<vmem>>, vector<1x8x128xf32>
    %5 = vector.shape_cast %4 : vector<1x8x128xf32> to vector<8x128xf32>
    %6 = tpu.concatenate %3, %5 in 1 : vector<8x128xf32>, vector<8x128xf32> -> vector<8x256xf32>
    %7 = tpu.iota {dimensions = array<i32: 1>} : vector<1x256xi32>
    %8 = vector.broadcast %1 : i32 to vector<1x256xi32>
    %9 = arith.addi %7, %8 : vector<1x256xi32>
    %c0_i32 = arith.constant 0 : i32
    %10 = vector.broadcast %c0_i32 : i32 to vector<1x256xi32>
    %11 = arith.cmpi sge, %9, %10 : vector<1x256xi32>
    %12 = arith.extui %11 : vector<1x256xi1> to vector<1x256xi32>
    %13 = arith.sitofp %12 : vector<1x256xi32> to vector<1x256xf32>
    %c0_6 = arith.constant 0 : index
    %c0_7 = arith.constant 0 : index
    %14 = vector.load %arg4[%c0_6, %c0_7] : memref<152x128xf32, #tpu.memory_space<vmem>>, vector<8x24xf32>
    %c0_8 = arith.constant 0 : index
    %c127 = arith.constant 127 : index
    %15 = vector.load %arg4[%c0_8, %c127] : memref<152x128xf32, #tpu.memory_space<vmem>>, vector<8x1xf32>
    %16 = vector.extract_strided_slice %6 {offsets = [0, 0], sizes = [8, 254], strides = [1, 1]} : vector<8x256xf32> to vector<8x254xf32>
    %17 = vector.extract_strided_slice %6 {offsets = [0, 1], sizes = [8, 254], strides = [1, 1]} : vector<8x256xf32> to vector<8x254xf32>
    %18 = vector.extract_strided_slice %6 {offsets = [0, 2], sizes = [8, 254], strides = [1, 1]} : vector<8x256xf32> to vector<8x254xf32>
    %19 = tpu.concatenate %16, %17, %18 in 0 : vector<8x254xf32>, vector<8x254xf32>, vector<8x254xf32> -> vector<24x254xf32>
    %cst = arith.constant dense<0.000000e+00> : vector<8x254xf32>
    %20 = tpu.matmul %14, %19, %cst {dimension_numbers = #tpu.dot_dimension_numbers<[1], [0], [0], [1], [0, 0, 1, 1], [], []>} : vector<8x24xf32>, vector<24x254xf32>, vector<8x254xf32> -> vector<8x254xf32>
    %21 = vector.broadcast %15 : vector<8x1xf32> to vector<8x254xf32>
    %22 = arith.addf %20, %21 : vector<8x254xf32>
    %cst_9 = arith.constant 0.000000e+00 : f32
    %23 = vector.broadcast %cst_9 : f32 to vector<8x254xf32>
    %24 = arith.maximumf %22, %23 : vector<8x254xf32>
    %25 = vector.extract_strided_slice %13 {offsets = [0, 2], sizes = [1, 254], strides = [1, 1]} : vector<1x256xf32> to vector<1x254xf32>
    %26 = vector.broadcast %25 : vector<1x254xf32> to vector<8x254xf32>
    %27 = arith.mulf %24, %26 : vector<8x254xf32>
    %c8 = arith.constant 8 : index
    %c0_10 = arith.constant 0 : index
    %28 = vector.load %arg4[%c8, %c0_10] : memref<152x128xf32, #tpu.memory_space<vmem>>, vector<8x24xf32>
    %c8_11 = arith.constant 8 : index
    %c127_12 = arith.constant 127 : index
    %29 = vector.load %arg4[%c8_11, %c127_12] : memref<152x128xf32, #tpu.memory_space<vmem>>, vector<8x1xf32>
    %30 = vector.extract_strided_slice %27 {offsets = [0, 0], sizes = [8, 252], strides = [1, 1]} : vector<8x254xf32> to vector<8x252xf32>
    %31 = vector.extract_strided_slice %27 {offsets = [0, 1], sizes = [8, 252], strides = [1, 1]} : vector<8x254xf32> to vector<8x252xf32>
    %32 = vector.extract_strided_slice %27 {offsets = [0, 2], sizes = [8, 252], strides = [1, 1]} : vector<8x254xf32> to vector<8x252xf32>
    %33 = tpu.concatenate %30, %31, %32 in 0 : vector<8x252xf32>, vector<8x252xf32>, vector<8x252xf32> -> vector<24x252xf32>
    %cst_13 = arith.constant dense<0.000000e+00> : vector<8x252xf32>
    %34 = tpu.matmul %28, %33, %cst_13 {dimension_numbers = #tpu.dot_dimension_numbers<[1], [0], [0], [1], [0, 0, 1, 1], [], []>} : vector<8x24xf32>, vector<24x252xf32>, vector<8x252xf32> -> vector<8x252xf32>
    %35 = vector.broadcast %29 : vector<8x1xf32> to vector<8x252xf32>
    %36 = arith.addf %34, %35 : vector<8x252xf32>
    %cst_14 = arith.constant 0.000000e+00 : f32
    %37 = vector.broadcast %cst_14 : f32 to vector<8x252xf32>
    %38 = arith.maximumf %36, %37 : vector<8x252xf32>
    %39 = vector.extract_strided_slice %6 {offsets = [0, 4], sizes = [8, 252], strides = [1, 1]} : vector<8x256xf32> to vector<8x252xf32>
    %c16 = arith.constant 16 : index
    %c0_15 = arith.constant 0 : index
    %40 = vector.load %arg4[%c16, %c0_15] : memref<152x128xf32, #tpu.memory_space<vmem>>, vector<8x8xf32>
    %c16_16 = arith.constant 16 : index
    %c127_17 = arith.constant 127 : index
    %41 = vector.load %arg4[%c16_16, %c127_17] : memref<152x128xf32, #tpu.memory_space<vmem>>, vector<8x1xf32>
    %cst_18 = arith.constant dense<0.000000e+00> : vector<8x252xf32>
    %42 = tpu.matmul %40, %39, %cst_18 {dimension_numbers = #tpu.dot_dimension_numbers<[1], [0], [0], [1], [0, 0, 1, 1], [], []>} : vector<8x8xf32>, vector<8x252xf32>, vector<8x252xf32> -> vector<8x252xf32>
    %43 = vector.broadcast %41 : vector<8x1xf32> to vector<8x252xf32>
    %44 = arith.addf %42, %43 : vector<8x252xf32>
    %45 = arith.addf %38, %44 : vector<8x252xf32>
    %46 = vector.extract_strided_slice %13 {offsets = [0, 4], sizes = [1, 252], strides = [1, 1]} : vector<1x256xf32> to vector<1x252xf32>
    %47 = vector.broadcast %46 : vector<1x252xf32> to vector<8x252xf32>
    %48 = arith.mulf %45, %47 : vector<8x252xf32>
    %c24 = arith.constant 24 : index
    %c0_19 = arith.constant 0 : index
    %49 = vector.load %arg4[%c24, %c0_19] : memref<152x128xf32, #tpu.memory_space<vmem>>, vector<16x24xf32>
    %c24_20 = arith.constant 24 : index
    %c127_21 = arith.constant 127 : index
    %50 = vector.load %arg4[%c24_20, %c127_21] : memref<152x128xf32, #tpu.memory_space<vmem>>, vector<16x1xf32>
    %51 = vector.extract_strided_slice %48 {offsets = [0, 0], sizes = [8, 248], strides = [1, 1]} : vector<8x252xf32> to vector<8x248xf32>
    %52 = vector.extract_strided_slice %48 {offsets = [0, 2], sizes = [8, 248], strides = [1, 1]} : vector<8x252xf32> to vector<8x248xf32>
    %53 = vector.extract_strided_slice %48 {offsets = [0, 4], sizes = [8, 248], strides = [1, 1]} : vector<8x252xf32> to vector<8x248xf32>
    %54 = tpu.concatenate %51, %52, %53 in 0 : vector<8x248xf32>, vector<8x248xf32>, vector<8x248xf32> -> vector<24x248xf32>
    %cst_22 = arith.constant dense<0.000000e+00> : vector<16x248xf32>
    %55 = tpu.matmul %49, %54, %cst_22 {dimension_numbers = #tpu.dot_dimension_numbers<[1], [0], [0], [1], [0, 0, 1, 1], [], []>} : vector<16x24xf32>, vector<24x248xf32>, vector<16x248xf32> -> vector<16x248xf32>
    %56 = vector.broadcast %50 : vector<16x1xf32> to vector<16x248xf32>
    %57 = arith.addf %55, %56 : vector<16x248xf32>
    %cst_23 = arith.constant 0.000000e+00 : f32
    %58 = vector.broadcast %cst_23 : f32 to vector<16x248xf32>
    %59 = arith.maximumf %57, %58 : vector<16x248xf32>
    %60 = vector.extract_strided_slice %13 {offsets = [0, 8], sizes = [1, 248], strides = [1, 1]} : vector<1x256xf32> to vector<1x248xf32>
    %61 = vector.broadcast %60 : vector<1x248xf32> to vector<16x248xf32>
    %62 = arith.mulf %59, %61 : vector<16x248xf32>
    %c40 = arith.constant 40 : index
    %c0_24 = arith.constant 0 : index
    %63 = vector.load %arg4[%c40, %c0_24] : memref<152x128xf32, #tpu.memory_space<vmem>>, vector<16x48xf32>
    %c40_25 = arith.constant 40 : index
    %c127_26 = arith.constant 127 : index
    %64 = vector.load %arg4[%c40_25, %c127_26] : memref<152x128xf32, #tpu.memory_space<vmem>>, vector<16x1xf32>
    %65 = vector.extract_strided_slice %62 {offsets = [0, 0], sizes = [16, 244], strides = [1, 1]} : vector<16x248xf32> to vector<16x244xf32>
    %66 = vector.extract_strided_slice %62 {offsets = [0, 2], sizes = [16, 244], strides = [1, 1]} : vector<16x248xf32> to vector<16x244xf32>
    %67 = vector.extract_strided_slice %62 {offsets = [0, 4], sizes = [16, 244], strides = [1, 1]} : vector<16x248xf32> to vector<16x244xf32>
    %68 = tpu.concatenate %65, %66, %67 in 0 : vector<16x244xf32>, vector<16x244xf32>, vector<16x244xf32> -> vector<48x244xf32>
    %cst_27 = arith.constant dense<0.000000e+00> : vector<16x244xf32>
    %69 = tpu.matmul %63, %68, %cst_27 {dimension_numbers = #tpu.dot_dimension_numbers<[1], [0], [0], [1], [0, 0, 1, 1], [], []>} : vector<16x48xf32>, vector<48x244xf32>, vector<16x244xf32> -> vector<16x244xf32>
    %70 = vector.broadcast %64 : vector<16x1xf32> to vector<16x244xf32>
    %71 = arith.addf %69, %70 : vector<16x244xf32>
    %cst_28 = arith.constant 0.000000e+00 : f32
    %72 = vector.broadcast %cst_28 : f32 to vector<16x244xf32>
    %73 = arith.maximumf %71, %72 : vector<16x244xf32>
    %74 = vector.extract_strided_slice %48 {offsets = [0, 8], sizes = [8, 244], strides = [1, 1]} : vector<8x252xf32> to vector<8x244xf32>
    %c56 = arith.constant 56 : index
    %c0_29 = arith.constant 0 : index
    %75 = vector.load %arg4[%c56, %c0_29] : memref<152x128xf32, #tpu.memory_space<vmem>>, vector<16x8xf32>
    %c56_30 = arith.constant 56 : index
    %c127_31 = arith.constant 127 : index
    %76 = vector.load %arg4[%c56_30, %c127_31] : memref<152x128xf32, #tpu.memory_space<vmem>>, vector<16x1xf32>
    %cst_32 = arith.constant dense<0.000000e+00> : vector<16x244xf32>
    %77 = tpu.matmul %75, %74, %cst_32 {dimension_numbers = #tpu.dot_dimension_numbers<[1], [0], [0], [1], [0, 0, 1, 1], [], []>} : vector<16x8xf32>, vector<8x244xf32>, vector<16x244xf32> -> vector<16x244xf32>
    %78 = vector.broadcast %76 : vector<16x1xf32> to vector<16x244xf32>
    %79 = arith.addf %77, %78 : vector<16x244xf32>
    %80 = arith.addf %73, %79 : vector<16x244xf32>
    %81 = vector.extract_strided_slice %13 {offsets = [0, 12], sizes = [1, 244], strides = [1, 1]} : vector<1x256xf32> to vector<1x244xf32>
    %82 = vector.broadcast %81 : vector<1x244xf32> to vector<16x244xf32>
    %83 = arith.mulf %80, %82 : vector<16x244xf32>
    %c72 = arith.constant 72 : index
    %c0_33 = arith.constant 0 : index
    %84 = vector.load %arg4[%c72, %c0_33] : memref<152x128xf32, #tpu.memory_space<vmem>>, vector<24x48xf32>
    %c72_34 = arith.constant 72 : index
    %c127_35 = arith.constant 127 : index
    %85 = vector.load %arg4[%c72_34, %c127_35] : memref<152x128xf32, #tpu.memory_space<vmem>>, vector<24x1xf32>
    %86 = vector.extract_strided_slice %83 {offsets = [0, 0], sizes = [16, 236], strides = [1, 1]} : vector<16x244xf32> to vector<16x236xf32>
    %87 = vector.extract_strided_slice %83 {offsets = [0, 4], sizes = [16, 236], strides = [1, 1]} : vector<16x244xf32> to vector<16x236xf32>
    %88 = vector.extract_strided_slice %83 {offsets = [0, 8], sizes = [16, 236], strides = [1, 1]} : vector<16x244xf32> to vector<16x236xf32>
    %89 = tpu.concatenate %86, %87, %88 in 0 : vector<16x236xf32>, vector<16x236xf32>, vector<16x236xf32> -> vector<48x236xf32>
    %cst_36 = arith.constant dense<0.000000e+00> : vector<24x236xf32>
    %90 = tpu.matmul %84, %89, %cst_36 {dimension_numbers = #tpu.dot_dimension_numbers<[1], [0], [0], [1], [0, 0, 1, 1], [], []>} : vector<24x48xf32>, vector<48x236xf32>, vector<24x236xf32> -> vector<24x236xf32>
    %91 = vector.broadcast %85 : vector<24x1xf32> to vector<24x236xf32>
    %92 = arith.addf %90, %91 : vector<24x236xf32>
    %cst_37 = arith.constant 0.000000e+00 : f32
    %93 = vector.broadcast %cst_37 : f32 to vector<24x236xf32>
    %94 = arith.maximumf %92, %93 : vector<24x236xf32>
    %95 = vector.extract_strided_slice %13 {offsets = [0, 20], sizes = [1, 236], strides = [1, 1]} : vector<1x256xf32> to vector<1x236xf32>
    %96 = vector.broadcast %95 : vector<1x236xf32> to vector<24x236xf32>
    %97 = arith.mulf %94, %96 : vector<24x236xf32>
    %c96 = arith.constant 96 : index
    %c0_38 = arith.constant 0 : index
    %98 = vector.load %arg4[%c96, %c0_38] : memref<152x128xf32, #tpu.memory_space<vmem>>, vector<24x72xf32>
    %c96_39 = arith.constant 96 : index
    %c127_40 = arith.constant 127 : index
    %99 = vector.load %arg4[%c96_39, %c127_40] : memref<152x128xf32, #tpu.memory_space<vmem>>, vector<24x1xf32>
    %100 = vector.extract_strided_slice %97 {offsets = [0, 0], sizes = [24, 228], strides = [1, 1]} : vector<24x236xf32> to vector<24x228xf32>
    %101 = vector.extract_strided_slice %97 {offsets = [0, 4], sizes = [24, 228], strides = [1, 1]} : vector<24x236xf32> to vector<24x228xf32>
    %102 = vector.extract_strided_slice %97 {offsets = [0, 8], sizes = [24, 228], strides = [1, 1]} : vector<24x236xf32> to vector<24x228xf32>
    %103 = tpu.concatenate %100, %101, %102 in 0 : vector<24x228xf32>, vector<24x228xf32>, vector<24x228xf32> -> vector<72x228xf32>
    %cst_41 = arith.constant dense<0.000000e+00> : vector<24x228xf32>
    %104 = tpu.matmul %98, %103, %cst_41 {dimension_numbers = #tpu.dot_dimension_numbers<[1], [0], [0], [1], [0, 0, 1, 1], [], []>} : vector<24x72xf32>, vector<72x228xf32>, vector<24x228xf32> -> vector<24x228xf32>
    %105 = vector.broadcast %99 : vector<24x1xf32> to vector<24x228xf32>
    %106 = arith.addf %104, %105 : vector<24x228xf32>
    %cst_42 = arith.constant 0.000000e+00 : f32
    %107 = vector.broadcast %cst_42 : f32 to vector<24x228xf32>
    %108 = arith.maximumf %106, %107 : vector<24x228xf32>
    %109 = vector.extract_strided_slice %83 {offsets = [0, 16], sizes = [16, 228], strides = [1, 1]} : vector<16x244xf32> to vector<16x228xf32>
    %c120 = arith.constant 120 : index
    %c0_43 = arith.constant 0 : index
    %110 = vector.load %arg4[%c120, %c0_43] : memref<152x128xf32, #tpu.memory_space<vmem>>, vector<24x16xf32>
    %c120_44 = arith.constant 120 : index
    %c127_45 = arith.constant 127 : index
    %111 = vector.load %arg4[%c120_44, %c127_45] : memref<152x128xf32, #tpu.memory_space<vmem>>, vector<24x1xf32>
    %cst_46 = arith.constant dense<0.000000e+00> : vector<24x228xf32>
    %112 = tpu.matmul %110, %109, %cst_46 {dimension_numbers = #tpu.dot_dimension_numbers<[1], [0], [0], [1], [0, 0, 1, 1], [], []>} : vector<24x16xf32>, vector<16x228xf32>, vector<24x228xf32> -> vector<24x228xf32>
    %113 = vector.broadcast %111 : vector<24x1xf32> to vector<24x228xf32>
    %114 = arith.addf %112, %113 : vector<24x228xf32>
    %115 = arith.addf %108, %114 : vector<24x228xf32>
    %116 = vector.extract_strided_slice %115 {offsets = [0, 100], sizes = [24, 128], strides = [1, 1]} : vector<24x228xf32> to vector<24x128xf32>
    %c144 = arith.constant 144 : index
    %c0_47 = arith.constant 0 : index
    %117 = vector.load %arg4[%c144, %c0_47] : memref<152x128xf32, #tpu.memory_space<vmem>>, vector<3x24xf32>
    %c144_48 = arith.constant 144 : index
    %c127_49 = arith.constant 127 : index
    %118 = vector.load %arg4[%c144_48, %c127_49] : memref<152x128xf32, #tpu.memory_space<vmem>>, vector<3x1xf32>
    %cst_50 = arith.constant dense<0.000000e+00> : vector<3x128xf32>
    %119 = tpu.matmul %117, %116, %cst_50 {dimension_numbers = #tpu.dot_dimension_numbers<[1], [0], [0], [1], [0, 0, 1, 1], [], []>} : vector<3x24xf32>, vector<24x128xf32>, vector<3x128xf32> -> vector<3x128xf32>
    %120 = vector.broadcast %118 : vector<3x1xf32> to vector<3x128xf32>
    %121 = arith.addf %119, %120 : vector<3x128xf32>
    %c0_51 = arith.constant 0 : index
    %c0_52 = arith.constant 0 : index
    %c0_53 = arith.constant 0 : index
    %122 = vector.load %arg5[%c0_51, %c0_52, %c0_53] : memref<1x3x128xf32, #tpu.memory_space<vmem>>, vector<1x3x128xf32>
    %123 = vector.shape_cast %122 : vector<1x3x128xf32> to vector<3x128xf32>
    %124 = vector.shape_cast %121 : vector<3x128xf32> to vector<1x3x128xf32>
    tpu.vector_store %arg5[%c0_51, %c0_52, %c0_53], %124 {strides = array<i32>} : memref<1x3x128xf32, #tpu.memory_space<vmem>>, vector<1x3x128xf32>,
    return
  }
  func.func @transform_0(%arg0: i32, %arg1: i32) -> (i32, i32, i32) {
    %c1_i32 = arith.constant 1 : i32
    %0 = arith.addi %arg1, %c1_i32 : i32
    %c1_i32_0 = arith.constant 1 : i32
    %1 = arith.muli %0, %c1_i32_0 : i32
    %c1_i32_1 = arith.constant 1 : i32
    %2 = arith.subi %1, %c1_i32_1 : i32
    %c0_i32 = arith.constant 0 : i32
    %c0_i32_2 = arith.constant 0 : i32
    return %arg0, %c0_i32, %2 : i32, i32, i32
  }
  func.func @transform_1(%arg0: i32, %arg1: i32) -> (i32, i32, i32) {
    %c1_i32 = arith.constant 1 : i32
    %0 = arith.addi %arg1, %c1_i32 : i32
    %c0_i32 = arith.constant 0 : i32
    %c0_i32_0 = arith.constant 0 : i32
    return %arg0, %c0_i32, %0 : i32, i32, i32
  }
  func.func @transform_2(%arg0: i32, %arg1: i32) -> (i32, i32) {
    %c0_i32 = arith.constant 0 : i32
    %c0_i32_0 = arith.constant 0 : i32
    %c0_i32_1 = arith.constant 0 : i32
    return %c0_i32, %c0_i32_0 : i32, i32
  }
  func.func @transform_3(%arg0: i32, %arg1: i32) -> (i32, i32, i32) {
    %c0_i32 = arith.constant 0 : i32
    %c0_i32_0 = arith.constant 0 : i32
    return %arg0, %c0_i32, %arg1 : i32, i32, i32
  }
}

</mosaic_0001>

<llo_original>
// kernel: _lambda_.1
$region0: #{_lambda_.1}
  #allocation0 [shape = 'u32[]', space=smem, size = 0x4, offset = 0x4, fixed_abs, tag = 'smem constant byte address 0x4 - core index']
  #allocation1 [shape = 'u32[144,128]{1,0:T(1,128)}', space=vmem, size = 0x12000, scoped, tag = 'internal scratch']
  %s0 = inlined_call_operand.vmem [shape: f32[2,8,256], index: 0, kind: input, shape index: {}, may-alias: {0,1}]
  %s1 = inlined_call_operand.vmem [shape: f32[2,8,256], index: 1, kind: input, shape index: {}, may-alias: {0,1}]
  %s2 = inlined_call_operand.vmem [shape: f32[152,128], index: 2, kind: input, shape index: {}]
  %s3 = inlined_call_operand.vmem [shape: f32[2,3,128], index: 3, kind: output, shape index: {}]
  %s4 = sld [smem:[#allocation0]]
  $region45: #{_lambda_.1} parent=0
    _
  %s6 = ssub.s32 1, %s4
  %s7 = scalar_select 0, %s6, %s4
  loop: start=0, step=1, limit=4
  $region2: #{_lambda_.1} parent=0 // loop_pre_header
    _
  $region3: #{_lambda_.1} parent=0 // loop_header
    %s9 = sphi 0, %s13
    %p10 = scmp.ge.s32.totalorder %s9, 4
    %s16 = sphi 0, %s28
    %s17 = sphi 0, %s24
    %s18 = sphi 0, %s16
    %s19 = sphi 0, %s17
    %s20 = sphi 0, %s18
    %s21 = sphi 0, %s19
    %s33 = sphi 0, %s35
    %s36 = sphi 0, %s33
    %s37 = sphi 0, %s36
    %s53 = sphi 0, %s37
    %s63 = sphi 0, %s65
    %s66 = sphi 0, %s63
    %s67 = sphi 0, %s66
    %s83 = sphi 0, %s67
    %s87 = sphi 0, %s87
    %s89 = sphi 0, %s87
    %s90 = sphi 0, %s89
    %s104 = sphi 0, %s90
    %s112 = sphi 0, %s114
    %s115 = sphi 0, %s112
    %s116 = sphi 0, %s115
    %s132 = sphi 0, %s116
  $region4: #{_lambda_.1} parent=0 // loop_header_branch
    %12 = sbr.rel (%p10) target = $region8
  $region5: #{_lambda_.1} parent=0 // loop_body
    %s14 = ssub.s32 %s9, 1
    %s15 = ssub.s32 %s9, 2
    %s22 = sadd.s32 1, %s17
    %p23 = scmp.ge.s32.totalorder %s22, 1
    %s24 = scalar_select %p23, 0, %s22
    %s25 = sadd.s32 1, %s16
    %s26 = scalar_select %p23, %s25, %s16
    %p27 = scmp.ge.s32.totalorder %s26, 2
    %s28 = scalar_select %p27, 0, %s26
    %s29 = ssub.s32 %s16, %s28
    %s30 = ssub.s32 %s17, %s24
    %s31 = sor.u32 %s29, %s30
    %p32 = scmp.eq.s32.totalorder %s31, 0
    %s34 = sadd.s32 %s33, 1
    %s35 = scalar_select %p32, %s33, %s34
    %p38 = pneg %p32
    %p39 = scmp.eq.s32.totalorder %s9, 1
    %p40 = por %p38, %p39
    %p41 = scmp.ne.s32.totalorder %s33, %s36
    %p42 = scmp.eq.s32.totalorder %s9, 0
    %p43 = por %p41, %p42
    %p44 = scmp.ne.s32.totalorder %s33, %s36
    %p45 = scmp.eq.s32.totalorder %s14, 1
    %p46 = por %p44, %p45
    %p47 = scmp.ne.s32.totalorder %s36, %s37
    %p48 = scmp.eq.s32.totalorder %s14, 0
    %p49 = por %p47, %p48
    %p50 = scmp.ne.s32.totalorder %s36, %s37
    %p51 = scmp.eq.s32.totalorder %s15, 1
    %p52 = por %p50, %p51
    %p54 = scmp.ne.s32.totalorder %s37, %s53
    %p55 = scmp.eq.s32.totalorder %s15, 0
    %p56 = por %p54, %p55
    %s57 = sadd.s32 %s17, 1
    %s58 = sadd.s32 %s24, 1
    %s59 = ssub.s32 %s16, %s28
    %s60 = ssub.s32 %s57, %s58
    %s61 = sor.u32 %s59, %s60
    %p62 = scmp.eq.s32.totalorder %s61, 0
    %s64 = sadd.s32 %s63, 1
    %s65 = scalar_select %p62, %s63, %s64
    %p68 = pneg %p62
    %p69 = scmp.eq.s32.totalorder %s9, 1
    %p70 = por %p68, %p69
    %p71 = scmp.ne.s32.totalorder %s63, %s66
    %p72 = scmp.eq.s32.totalorder %s9, 0
    %p73 = por %p71, %p72
    %p74 = scmp.ne.s32.totalorder %s63, %s66
    %p75 = scmp.eq.s32.totalorder %s14, 1
    %p76 = por %p74, %p75
    %p77 = scmp.ne.s32.totalorder %s66, %s67
    %p78 = scmp.eq.s32.totalorder %s14, 0
    %p79 = por %p77, %p78
    %p80 = scmp.ne.s32.totalorder %s66, %s67
    %p81 = scmp.eq.s32.totalorder %s15, 1
    %p82 = por %p80, %p81
    %p84 = scmp.ne.s32.totalorder %s67, %s83
    %p85 = scmp.eq.s32.totalorder %s15, 0
    %p86 = por %p84, %p85
    %s88 = sadd.s32 %s87, 1
    %p91 = scmp.eq.s32.totalorder %s9, 1
    %p92 = scmp.ne.s32.totalorder %s87, %s89
    %p93 = scmp.eq.s32.totalorder %s9, 0
    %p94 = por %p92, %p93
    %p95 = scmp.ne.s32.totalorder %s87, %s89
    %p96 = scmp.eq.s32.totalorder %s14, 1
    %p97 = por %p95, %p96
    %p98 = scmp.ne.s32.totalorder %s89, %s90
    %p99 = scmp.eq.s32.totalorder %s14, 0
    %p100 = por %p98, %p99
    %p101 = scmp.ne.s32.totalorder %s89, %s90
    %p102 = scmp.eq.s32.totalorder %s15, 1
    %p103 = por %p101, %p102
    %p105 = scmp.ne.s32.totalorder %s90, %s104
    %p106 = scmp.eq.s32.totalorder %s15, 0
    %p107 = por %p105, %p106
    %s108 = ssub.s32 %s16, %s28
    %s109 = ssub.s32 %s17, %s24
    %s110 = sor.u32 %s108, %s109
    %p111 = scmp.eq.s32.totalorder %s110, 0
    %s113 = sadd.s32 %s112, 1
    %s114 = scalar_select %p111, %s112, %s113
    %p117 = pneg %p111
    %p118 = scmp.eq.s32.totalorder %s9, 1
    %p119 = por %p117, %p118
    %p120 = scmp.ne.s32.totalorder %s112, %s115
    %p121 = scmp.eq.s32.totalorder %s9, 0
    %p122 = por %p120, %p121
    %p123 = scmp.ne.s32.totalorder %s112, %s115
    %p124 = scmp.eq.s32.totalorder %s14, 1
    %p125 = por %p123, %p124
    %p126 = scmp.ne.s32.totalorder %s115, %s116
    %p127 = scmp.eq.s32.totalorder %s14, 0
    %p128 = por %p126, %p127
    %p129 = scmp.ne.s32.totalorder %s115, %s116
    %p130 = scmp.eq.s32.totalorder %s15, 1
    %p131 = por %p129, %p130
    %p133 = scmp.ne.s32.totalorder %s116, %s132
    %p134 = scmp.eq.s32.totalorder %s15, 0
    %p135 = por %p133, %p134
    %p136 = scmp.le.s32.totalorder 1, %s9
    %p137 = scmp.lt.s32.totalorder %s9, 3
    %p138 = pnand %p136, %p137
    %p139 = pneg %p138
    // Predicated region
    $region9: #{_lambda_.1} parent=5 // pred_check
      _
    $region10: #{_lambda_.1} parent=5 // pred_check_branch
      %141 = sbr.rel (%p138) target = $region12
    $region11: #{_lambda_.1} parent=5 // pred_region
      %s142 = ssub.s32 %s9, 1
      // Predicated region
      $region13: #{_lambda_.1} parent=11 // pred_check
        %p143 = pneg %p100
      $region14: #{_lambda_.1} parent=11 // pred_check_branch
        %145 = sbr.rel (%p143) target = $region16
      $region15: #{_lambda_.1} parent=11 // pred_region
        _
      $region16: #{_lambda_.1} parent=11 // pred_fallthru
        _
    $region12: #{_lambda_.1} parent=5 // pred_fallthru
      _
    %p146 = scmp.lt.s32.totalorder %s9, 2
    // Predicated region
    $region17: #{_lambda_.1} parent=5 // pred_check
      %p147 = pneg %p146
    $region18: #{_lambda_.1} parent=5 // pred_check_branch
      %149 = sbr.rel (%p147) target = $region20
    $region19: #{_lambda_.1} parent=5 // pred_region
      // Predicated region
      $region21: #{_lambda_.1} parent=19 // pred_check
        %p150 = pneg %p43
      $region22: #{_lambda_.1} parent=19 // pred_check_branch
        %152 = sbr.rel (%p150) target = $region24
      $region23: #{_lambda_.1} parent=19 // pred_region
        %p153 = scmp.lt.s32.totalorder %s16, 1
        %s154 = scalar_select %p153, %s16, 1
        %p155 = scmp.lt.s32.totalorder %s17, 1
        %s156 = scalar_select %p155, %s17, 1
        %s157 = smul.addr %s154, 2
        %s158 = sadd.s32 %s156, %s157
        %s159 = smul.addr %s158, 8
        %s160 = scalar_lea.vmem %s0, %s159
      $region24: #{_lambda_.1} parent=19 // pred_fallthru
        _
      // Predicated region
      $region25: #{_lambda_.1} parent=19 // pred_check
        %p161 = pneg %p73
      $region26: #{_lambda_.1} parent=19 // pred_check_branch
        %163 = sbr.rel (%p161) target = $region28
      $region27: #{_lambda_.1} parent=19 // pred_region
        %s164 = sadd.s32 %s17, 1
        %p165 = scmp.lt.s32.totalorder %s16, 1
        %s166 = scalar_select %p165, %s16, 1
        %p167 = scmp.lt.s32.totalorder %s164, 1
        %s168 = scalar_select %p167, %s164, 1
        %s169 = smul.addr %s166, 2
        %s170 = sadd.s32 %s168, %s169
        %s171 = smul.addr %s170, 8
        %s172 = scalar_lea.vmem %s1, %s171
        %s173 = sadd.s32 %s17, 1
      $region28: #{_lambda_.1} parent=19 // pred_fallthru
        _
    $region20: #{_lambda_.1} parent=5 // pred_fallthru
      _
    %p174 = scmp.le.s32.totalorder 1, %s9
    %p175 = scmp.lt.s32.totalorder %s9, 3
    %p176 = pnand %p174, %p175
    %p177 = pneg %p176
    // Predicated region
    $region29: #{_lambda_.1} parent=5 // pred_check
      _
    $region30: #{_lambda_.1} parent=5 // pred_check_branch
      %179 = sbr.rel (%p176) target = $region32
    $region31: #{_lambda_.1} parent=5 // pred_region
      %s180 = ssub.s32 %s9, 1
      %p181 = scmp.lt.s32.totalorder %s18, 1
      %s182 = scalar_select %p181, %s18, 1
      %p183 = scmp.lt.s32.totalorder %s19, 1
      %s184 = scalar_select %p183, %s19, 1
      %s185 = smul.addr %s182, 2
      %s186 = sadd.s32 %s184, %s185
      %s187 = smul.addr %s186, 8
      %s188 = scalar_lea.vmem %s0, %s187
      %p189 = pneg %p49
      %p190 = pneg %p46
      %s191 = sadd.s32 %s19, 1
      %p192 = scmp.lt.s32.totalorder %s18, 1
      %s193 = scalar_select %p192, %s18, 1
      %p194 = scmp.lt.s32.totalorder %s191, 1
      %s195 = scalar_select %p194, %s191, 1
      %s196 = smul.addr %s193, 2
      %s197 = sadd.s32 %s195, %s196
      %s198 = smul.addr %s197, 8
      %s199 = scalar_lea.vmem %s1, %s198
      %p200 = pneg %p79
      %p201 = pneg %p76
      %p202 = pneg %p100
      %p203 = pneg %p97
      %p204 = pneg %p128
      %p205 = pneg %p125
      %p206 = scmp.lt.s32.totalorder %s18, 1
      %s207 = scalar_select %p206, %s18, 1
      %p208 = scmp.lt.s32.totalorder %s19, 0
      %s209 = scalar_select %p208, %s19, 0
      %s210 = sadd.s32 %s209, %s207
      %s211 = smul.addr %s210, 4
      %s212 = scalar_lea.vmem %s3, %s211
      %p213 = scmp.lt.s32.totalorder %s18, 1
      %s214 = scalar_select %p213, %s18, 1
      %p215 = scmp.lt.s32.totalorder %s19, 1
      %s216 = scalar_select %p215, %s19, 1
      %s217 = smul.addr %s214, 2
      %s218 = sadd.s32 %s216, %s217
      %s219 = smul.addr %s218, 8
      %s220 = scalar_lea.vmem %s0, %s219
      %s221 = sadd.s32 %s19, 1
      %p222 = scmp.lt.s32.totalorder %s18, 1
      %s223 = scalar_select %p222, %s18, 1
      %p224 = scmp.lt.s32.totalorder %s221, 1
      %s225 = scalar_select %p224, %s221, 1
      %s226 = smul.addr %s223, 2
      %s227 = sadd.s32 %s225, %s226
      %s228 = smul.addr %s227, 8
      %s229 = scalar_lea.vmem %s1, %s228
      %s230 = sadd.s32 %s19, 1
      %p231 = scmp.lt.s32.totalorder %s18, 1
      %s232 = scalar_select %p231, %s18, 1
      %p233 = scmp.lt.s32.totalorder %s19, 0
      %s234 = scalar_select %p233, %s19, 0
      %s235 = sadd.s32 %s234, %s232
      %s236 = smul.addr %s235, 4
      %s237 = scalar_lea.vmem %s3, %s236
      %s238 = smul.u32 %s19, 128
      %s239 = ssub.s32 %s238, 128
      %v240 = vld [vmem:[%s220] sm:$0xff]
      %v241 = vld [vmem:[%s229] sm:$0xff]
      %v242 = vlaneseq
      %v243 = vand.u32 %v242, 127
      %v244 = vadd.s32 %v243, 128
      %v245 = vstv %s239
      %v246 = vadd.s32 %v243, %v245
      %v247 = vadd.s32 %v244, %v245
      %vm248 = vcmp.ge.s32.totalorder %v246, 0
      %vm249 = vcmp.ge.s32.totalorder %v247, 0
      %v250 = vsel %vm248, 1, 0
      %v251 = vsel %vm249, 1, 0
      %v252 = vcvt.s32.f32 %v250
      %v253 = vcvt.s32.f32 %v251
      %v254 = vld [vmem:[%s2] sm:$0xff]
      %257 = vrot.lane.b32.xlu0 %v240, 127
      %v258 = vpop.permute.xlu0 %257
      %259 = vrot.lane.b32.xlu0 %v241, 127
      %v260 = vpop.permute.xlu0 %259
      %vm261 = vcmask 1039360
      %v262 = vsel %vm261, %v258, %v260
      %265 = vrot.lane.b32.xlu0 %v240, 126
      %v266 = vpop.permute.xlu0 %265
      %267 = vrot.lane.b32.xlu0 %v241, 126
      %v268 = vpop.permute.xlu0 %267
      %vm269 = vcmask 1031168
      %v270 = vsel %vm269, %v266, %v268
      %274 = vset.pattern.permute.xlu0 127
      %275 = vperm.xlu0 %274, %v254
      %v276 = vpop.permute.xlu0 %275
      %vm278 = vcmask 195584
      %v279 = vsel %vm278, %v254, 0
      %281 = vmatprep.subr.mxu0 %v241
      %282 = vmatpush1.msra.mxu0 %v240
      %283 = vmatprep.subr.mxu0 %v260
      %284 = vmatpush1.msra.mxu0 %v262
      %285 = vmatprep.subr.mxu0 %v268
      %286 = vmatpush1.msra.mxu0 %v270
      %287 = vmatprep.subr.mxu0 0.0
      %288 = vmatpush1.msra.mxu0 0.0
      %289 = vmatprep.subr.mxu0 0.0
      %290 = vmatpush1.msra.mxu0 0.0
      %291 = vmatprep.subr.mxu0 0.0
      %292 = vmatpush1.msra.mxu0 0.0
      %293 = vmatprep.subr.mxu0 0.0
      %294 = vmatpush1.msra.mxu0 0.0
      %295 = vmatprep.subr.mxu0 0.0
      %296 = vmatpush1.msra.mxu0 0.0
      %297 = vmatprep.subr.mxu0 0.0
      %298 = vmatpush1.msra.mxu0 0.0
      %299 = vmatprep.subr.mxu0 0.0
      %300 = vmatpush1.msra.mxu0 0.0
      %301 = vmatprep.subr.mxu0 0.0
      %302 = vmatpush1.msra.mxu0 0.0
      %303 = vmatprep.subr.mxu0 0.0
      %304 = vmatpush1.msra.mxu0 0.0
      %305 = vmatprep.subr.mxu0 0.0
      %306 = vmatpush1.msra.mxu0 0.0
      %307 = vmatprep.subr.mxu0 0.0
      %308 = vmatpush1.msra.mxu0 0.0
      %309 = vmatprep.subr.mxu0 0.0
      %310 = vmatpush1.msra.mxu0 0.0
      %311 = vmatprep.subr.mxu0 0.0
      %312 = vmatpush1.msra.mxu0 0.0
      %313 = vmatprep.subr.mxu0 0.0
      %314 = vmatpush1.msra.mxu0 0.0
      %315 = vmatprep.subr.mxu0 0.0
      %316 = vmatpush1.msra.mxu0 0.0
      %317 = vmatprep.subr.mxu0 0.0
      %318 = vmatpush1.msra.mxu0 0.0
      %319 = vmatprep.subr.mxu0 0.0
      %320 = vmatpush1.msra.mxu0 0.0
      %321 = vmatprep.subr.mxu0 0.0
      %322 = vmatpush1.msra.mxu0 0.0
      %323 = vmatprep.subr.mxu0 0.0
      %324 = vmatpush1.msra.mxu0 0.0
      %325 = vmatprep.subr.mxu0 0.0
      %326 = vmatpush1.msra.mxu0 0.0
      %327 = vmatprep.subr.mxu0 0.0
      %328 = vmatpush1.msra.mxu0 0.0
      %329 = vmatprep.subr.mxu0 0.0
      %330 = vmatpush1.msra.mxu0 0.0
      %331 = vmatprep.subr.mxu0 0.0
      %332 = vmatpush1.msra.mxu0 0.0
      %333 = vmatprep.subr.mxu0 0.0
      %334 = vmatpush1.msra.mxu0 0.0
      %335 = vmatprep.subr.mxu0 0.0
      %336 = vmatpush1.msra.mxu0 0.0
      %337 = vmatprep.subr.mxu0 0.0
      %338 = vmatpush1.msra.mxu0 0.0
      %339 = vmatprep.subr.mxu0 0.0
      %340 = vmatpush1.msra.mxu0 0.0
      %341 = vmatprep.subr.mxu0 0.0
      %342 = vmatpush1.msra.mxu0 0.0
      %343 = vmatprep.subr.mxu0 0.0
      %344 = vmatpush1.msra.mxu0 0.0
      %345 = vmatprep.mubr.f32.mxu0 0.0
      %346 = vmatmul.mubr.f32.gmra.mrb[0].mxu0 %v279
      %v347 = vpop.f32.mrb[0].mxu0
      %v348 = vadd.f32 %v276, %v347
      %v349 = vpop.f32.mrb[0].mxu0
      %v350 = vadd.f32 %v276, %v349
      %351 = vdwg.mxu0
      %v352 = vmax.f32 %v348, 0.0
      %v353 = vmax.f32 %v350, 0.0
      %356 = vrot.lane.b32.xlu0 %v252, 126
      %v357 = vpop.permute.xlu0 %356
      %358 = vrot.lane.b32.xlu0 %v253, 126
      %v359 = vpop.permute.xlu0 %358
      %v360 = vsel %vm269, %v357, %v359
      %v363 = vmul.f32 %v352, %v360
      %v364 = vmul.f32 %v353, %v359
      %v365 = vld [vmem:[%s2 + $0x8] sm:$0xff]
      %368 = vrot.lane.b32.xlu0 %v363, 127
      %v369 = vpop.permute.xlu0 %368
      %370 = vrot.lane.b32.xlu0 %v364, 127
      %v371 = vpop.permute.xlu0 %370
      %v372 = vsel %vm261, %v369, %v371
      %375 = vrot.lane.b32.xlu0 %v363, 126
      %v376 = vpop.permute.xlu0 %375
      %377 = vrot.lane.b32.xlu0 %v364, 126
      %v378 = vpop.permute.xlu0 %377
      %v379 = vsel %vm269, %v376, %v378
      %383 = vset.pattern.permute.xlu0 127
      %384 = vperm.xlu0 %383, %v365
      %v385 = vpop.permute.xlu0 %384
      %v387 = vsel %vm278, %v365, 0
      %389 = vmatprep.subr.mxu0 %v364
      %390 = vmatpush1.msra.mxu0 %v363
      %391 = vmatprep.subr.mxu0 %v371
      %392 = vmatpush1.msra.mxu0 %v372
      %393 = vmatprep.subr.mxu0 %v378
      %394 = vmatpush1.msra.mxu0 %v379
      %395 = vmatprep.subr.mxu0 0.0
      %396 = vmatpush1.msra.mxu0 0.0
      %397 = vmatprep.subr.mxu0 0.0
      %398 = vmatpush1.msra.mxu0 0.0
      %399 = vmatprep.subr.mxu0 0.0
      %400 = vmatpush1.msra.mxu0 0.0
      %401 = vmatprep.subr.mxu0 0.0
      %402 = vmatpush1.msra.mxu0 0.0
      %403 = vmatprep.subr.mxu0 0.0
      %404 = vmatpush1.msra.mxu0 0.0
      %405 = vmatprep.subr.mxu0 0.0
      %406 = vmatpush1.msra.mxu0 0.0
      %407 = vmatprep.subr.mxu0 0.0
      %408 = vmatpush1.msra.mxu0 0.0
      %409 = vmatprep.subr.mxu0 0.0
      %410 = vmatpush1.msra.mxu0 0.0
      %411 = vmatprep.subr.mxu0 0.0
      %412 = vmatpush1.msra.mxu0 0.0
      %413 = vmatprep.subr.mxu0 0.0
      %414 = vmatpush1.msra.mxu0 0.0
      %415 = vmatprep.subr.mxu0 0.0
      %416 = vmatpush1.msra.mxu0 0.0
      %417 = vmatprep.subr.mxu0 0.0
      %418 = vmatpush1.msra.mxu0 0.0
      %419 = vmatprep.subr.mxu0 0.0
      %420 = vmatpush1.msra.mxu0 0.0
      %421 = vmatprep.subr.mxu0 0.0
      %422 = vmatpush1.msra.mxu0 0.0
      %423 = vmatprep.subr.mxu0 0.0
      %424 = vmatpush1.msra.mxu0 0.0
      %425 = vmatprep.subr.mxu0 0.0
      %426 = vmatpush1.msra.mxu0 0.0
      %427 = vmatprep.subr.mxu0 0.0
      %428 = vmatpush1.msra.mxu0 0.0
      %429 = vmatprep.subr.mxu0 0.0
      %430 = vmatpush1.msra.mxu0 0.0
      %431 = vmatprep.subr.mxu0 0.0
      %432 = vmatpush1.msra.mxu0 0.0
      %433 = vmatprep.subr.mxu0 0.0
      %434 = vmatpush1.msra.mxu0 0.0
      %435 = vmatprep.subr.mxu0 0.0
      %436 = vmatpush1.msra.mxu0 0.0
      %437 = vmatprep.subr.mxu0 0.0
      %438 = vmatpush1.msra.mxu0 0.0
      %439 = vmatprep.subr.mxu0 0.0
      %440 = vmatpush1.msra.mxu0 0.0
      %441 = vmatprep.subr.mxu0 0.0
      %442 = vmatpush1.msra.mxu0 0.0
      %443 = vmatprep.subr.mxu0 0.0
      %444 = vmatpush1.msra.mxu0 0.0
      %445 = vmatprep.subr.mxu0 0.0
      %446 = vmatpush1.msra.mxu0 0.0
      %447 = vmatprep.subr.mxu0 0.0
      %448 = vmatpush1.msra.mxu0 0.0
      %449 = vmatprep.subr.mxu0 0.0
      %450 = vmatpush1.msra.mxu0 0.0
      %451 = vmatprep.subr.mxu0 0.0
      %452 = vmatpush1.msra.mxu0 0.0
      %453 = vmatprep.mubr.f32.mxu0 0.0
      %454 = vmatmul.mubr.f32.gmra.mrb[0].mxu0 %v387
      %v455 = vpop.f32.mrb[0].mxu0
      %v456 = vadd.f32 %v385, %v455
      %v457 = vpop.f32.mrb[0].mxu0
      %v458 = vadd.f32 %v385, %v457
      %459 = vdwg.mxu0
      %v460 = vmax.f32 %v456, 0.0
      %v461 = vmax.f32 %v458, 0.0
      %v462 = vld [vmem:[%s2 + $0x10] sm:$0xff]
      %464 = vset.pattern.permute.xlu0 127
      %465 = vperm.xlu0 %464, %v462
      %v466 = vpop.permute.xlu0 %465
      %468 = vrot.lane.b32.xlu0 %v240, 124
      %v469 = vpop.permute.xlu0 %468
      %470 = vrot.lane.b32.xlu0 %v241, 124
      %v471 = vpop.permute.xlu0 %470
      %vm472 = vcmask 1014784
      %v473 = vsel %vm472, %v469, %v471
      %vm476 = vcmask 64512
      %v477 = vsel %vm476, %v462, 0
      %479 = vmatprep.subr.mxu0 %v471
      %480 = vmatpush1.msra.mxu0 %v473
      %481 = vmatprep.subr.mxu0 0.0
      %482 = vmatpush1.msra.mxu0 0.0
      %483 = vmatprep.subr.mxu0 0.0
      %484 = vmatpush1.msra.mxu0 0.0
      %485 = vmatprep.subr.mxu0 0.0
      %486 = vmatpush1.msra.mxu0 0.0
      %487 = vmatprep.subr.mxu0 0.0
      %488 = vmatpush1.msra.mxu0 0.0
      %489 = vmatprep.subr.mxu0 0.0
      %490 = vmatpush1.msra.mxu0 0.0
      %491 = vmatprep.subr.mxu0 0.0
      %492 = vmatpush1.msra.mxu0 0.0
      %493 = vmatprep.subr.mxu0 0.0
      %494 = vmatpush1.msra.mxu0 0.0
      %495 = vmatprep.subr.mxu0 0.0
      %496 = vmatpush1.msra.mxu0 0.0
      %497 = vmatprep.subr.mxu0 0.0
      %498 = vmatpush1.msra.mxu0 0.0
      %499 = vmatprep.subr.mxu0 0.0
      %500 = vmatpush1.msra.mxu0 0.0
      %501 = vmatprep.subr.mxu0 0.0
      %502 = vmatpush1.msra.mxu0 0.0
      %503 = vmatprep.subr.mxu0 0.0
      %504 = vmatpush1.msra.mxu0 0.0
      %505 = vmatprep.subr.mxu0 0.0
      %506 = vmatpush1.msra.mxu0 0.0
      %507 = vmatprep.subr.mxu0 0.0
      %508 = vmatpush1.msra.mxu0 0.0
      %509 = vmatprep.subr.mxu0 0.0
      %510 = vmatpush1.msra.mxu0 0.0
      %511 = vmatprep.subr.mxu0 0.0
      %512 = vmatpush1.msra.mxu0 0.0
      %513 = vmatprep.subr.mxu0 0.0
      %514 = vmatpush1.msra.mxu0 0.0
      %515 = vmatprep.subr.mxu0 0.0
      %516 = vmatpush1.msra.mxu0 0.0
      %517 = vmatprep.subr.mxu0 0.0
      %518 = vmatpush1.msra.mxu0 0.0
      %519 = vmatprep.subr.mxu0 0.0
      %520 = vmatpush1.msra.mxu0 0.0
      %521 = vmatprep.subr.mxu0 0.0
      %522 = vmatpush1.msra.mxu0 0.0
      %523 = vmatprep.subr.mxu0 0.0
      %524 = vmatpush1.msra.mxu0 0.0
      %525 = vmatprep.subr.mxu0 0.0
      %526 = vmatpush1.msra.mxu0 0.0
      %527 = vmatprep.subr.mxu0 0.0
      %528 = vmatpush1.msra.mxu0 0.0
      %529 = vmatprep.subr.mxu0 0.0
      %530 = vmatpush1.msra.mxu0 0.0
      %531 = vmatprep.subr.mxu0 0.0
      %532 = vmatpush1.msra.mxu0 0.0
      %533 = vmatprep.subr.mxu0 0.0
      %534 = vmatpush1.msra.mxu0 0.0
      %535 = vmatprep.subr.mxu0 0.0
      %536 = vmatpush1.msra.mxu0 0.0
      %537 = vmatprep.subr.mxu0 0.0
      %538 = vmatpush1.msra.mxu0 0.0
      %539 = vmatprep.subr.mxu0 0.0
      %540 = vmatpush1.msra.mxu0 0.0
      %541 = vmatprep.subr.mxu0 0.0
      %542 = vmatpush1.msra.mxu0 0.0
      %543 = vmatprep.mubr.f32.mxu0 0.0
      %544 = vmatmul.mubr.f32.gmra.mrb[0].mxu0 %v477
      %v545 = vpop.f32.mrb[0].mxu0
      %v546 = vadd.f32 %v466, %v545
      %v547 = vpop.f32.mrb[0].mxu0
      %v548 = vadd.f32 %v466, %v547
      %549 = vdwg.mxu0
      %v550 = vadd.f32 %v460, %v546
      %v551 = vadd.f32 %v461, %v548
      %552 = vrot.lane.b32.xlu0 %v252, 124
      %v553 = vpop.permute.xlu0 %552
      %554 = vrot.lane.b32.xlu0 %v253, 124
      %v555 = vpop.permute.xlu0 %554
      %v556 = vsel %vm472, %v553, %v555
      %v559 = vmul.f32 %v550, %v556
      %v560 = vmul.f32 %v551, %v555
      %v561 = vld [vmem:[%s2 + $0x18] sm:$0xff]
      %v562 = vld [vmem:[%s2 + $0x20] sm:$0xff]
      %565 = vrot.lane.b32.xlu0 %v559, 126
      %v566 = vpop.permute.xlu0 %565
      %567 = vrot.lane.b32.xlu0 %v560, 126
      %v568 = vpop.permute.xlu0 %567
      %v569 = vsel %vm269, %v566, %v568
      %572 = vrot.lane.b32.xlu0 %v559, 124
      %v573 = vpop.permute.xlu0 %572
      %574 = vrot.lane.b32.xlu0 %v560, 124
      %v575 = vpop.permute.xlu0 %574
      %v576 = vsel %vm472, %v573, %v575
      %580 = vset.pattern.permute.xlu0 127
      %581 = vperm.xlu0 %580, %v561
      %v582 = vpop.permute.xlu0 %581
      %585 = vset.pattern.permute.xlu0 127
      %586 = vperm.xlu0 %585, %v562
      %v587 = vpop.permute.xlu0 %586
      %v589 = vsel %vm278, %v561, 0
      %v591 = vsel %vm278, %v562, 0
      %593 = vmatprep.subr.mxu0 %v560
      %594 = vmatpush1.msra.mxu0 %v559
      %595 = vmatprep.subr.mxu0 %v568
      %596 = vmatpush1.msra.mxu0 %v569
      %597 = vmatprep.subr.mxu0 %v575
      %598 = vmatpush1.msra.mxu0 %v576
      %599 = vmatprep.subr.mxu0 0.0
      %600 = vmatpush1.msra.mxu0 0.0
      %601 = vmatprep.subr.mxu0 0.0
      %602 = vmatpush1.msra.mxu0 0.0
      %603 = vmatprep.subr.mxu0 0.0
      %604 = vmatpush1.msra.mxu0 0.0
      %605 = vmatprep.subr.mxu0 0.0
      %606 = vmatpush1.msra.mxu0 0.0
      %607 = vmatprep.subr.mxu0 0.0
      %608 = vmatpush1.msra.mxu0 0.0
      %609 = vmatprep.subr.mxu0 0.0
      %610 = vmatpush1.msra.mxu0 0.0
      %611 = vmatprep.subr.mxu0 0.0
      %612 = vmatpush1.msra.mxu0 0.0
      %613 = vmatprep.subr.mxu0 0.0
      %614 = vmatpush1.msra.mxu0 0.0
      %615 = vmatprep.subr.mxu0 0.0
      %616 = vmatpush1.msra.mxu0 0.0
      %617 = vmatprep.subr.mxu0 0.0
      %618 = vmatpush1.msra.mxu0 0.0
      %619 = vmatprep.subr.mxu0 0.0
      %620 = vmatpush1.msra.mxu0 0.0
      %621 = vmatprep.subr.mxu0 0.0
      %622 = vmatpush1.msra.mxu0 0.0
      %623 = vmatprep.subr.mxu0 0.0
      %624 = vmatpush1.msra.mxu0 0.0
      %625 = vmatprep.subr.mxu0 0.0
      %626 = vmatpush1.msra.mxu0 0.0
      %627 = vmatprep.subr.mxu0 0.0
      %628 = vmatpush1.msra.mxu0 0.0
      %629 = vmatprep.subr.mxu0 0.0
      %630 = vmatpush1.msra.mxu0 0.0
      %631 = vmatprep.subr.mxu0 0.0
      %632 = vmatpush1.msra.mxu0 0.0
      %633 = vmatprep.subr.mxu0 0.0
      %634 = vmatpush1.msra.mxu0 0.0
      %635 = vmatprep.subr.mxu0 0.0
      %636 = vmatpush1.msra.mxu0 0.0
      %637 = vmatprep.subr.mxu0 0.0
      %638 = vmatpush1.msra.mxu0 0.0
      %639 = vmatprep.subr.mxu0 0.0
      %640 = vmatpush1.msra.mxu0 0.0
      %641 = vmatprep.subr.mxu0 0.0
      %642 = vmatpush1.msra.mxu0 0.0
      %643 = vmatprep.subr.mxu0 0.0
      %644 = vmatpush1.msra.mxu0 0.0
      %645 = vmatprep.subr.mxu0 0.0
      %646 = vmatpush1.msra.mxu0 0.0
      %647 = vmatprep.subr.mxu0 0.0
      %648 = vmatpush1.msra.mxu0 0.0
      %649 = vmatprep.subr.mxu0 0.0
      %650 = vmatpush1.msra.mxu0 0.0
      %651 = vmatprep.subr.mxu0 0.0
      %652 = vmatpush1.msra.mxu0 0.0
      %653 = vmatprep.subr.mxu0 0.0
      %654 = vmatpush1.msra.mxu0 0.0
      %655 = vmatprep.subr.mxu0 0.0
      %656 = vmatpush1.msra.mxu0 0.0
      %657 = vmatprep.mubr.f32.mxu0 0.0
      %658 = vmatmul.mubr.f32.gmra.mrb[0].mxu0 %v589
      %v659 = vpop.f32.mrb[0].mxu0
      %v660 = vadd.f32 %v582, %v659
      %v661 = vpop.f32.mrb[0].mxu0
      %v662 = vadd.f32 %v582, %v661
      %663 = vmatprep.mubr.f32.mxu0 0.0
      %664 = vmatmul.mubr.f32.gmra.mrb[0].mxu0 %v591
      %v665 = vpop.f32.mrb[0].mxu0
      %v666 = vadd.f32 %v587, %v665
      %v667 = vpop.f32.mrb[0].mxu0
      %v668 = vadd.f32 %v587, %v667
      %669 = vdwg.mxu0
      %v670 = vmax.f32 %v660, 0.0
      %v671 = vmax.f32 %v662, 0.0
      %v672 = vmax.f32 %v666, 0.0
      %v673 = vmax.f32 %v668, 0.0
      %674 = vrot.lane.b32.xlu0 %v252, 120
      %v675 = vpop.permute.xlu0 %674
      %676 = vrot.lane.b32.xlu0 %v253, 120
      %v677 = vpop.permute.xlu0 %676
      %vm678 = vcmask 982016
      %v679 = vsel %vm678, %v675, %v677
      %v682 = vmul.f32 %v670, %v679
      %v683 = vmul.f32 %v671, %v677
      %v684 = vmul.f32 %v672, %v679
      %v685 = vmul.f32 %v673, %v677
      %v686 = vld [vmem:[%s2 + $0x28] sm:$0xff]
      %v687 = vld [vmem:[%s2 + $0x30] sm:$0xff]
      %692 = vrot.lane.b32.xlu0 %v682, 126
      %v693 = vpop.permute.xlu0 %692
      %694 = vrot.lane.b32.xlu0 %v683, 126
      %v695 = vpop.permute.xlu0 %694
      %696 = vrot.lane.b32.xlu0 %v684, 126
      %v697 = vpop.permute.xlu0 %696
      %698 = vrot.lane.b32.xlu0 %v685, 126
      %v699 = vpop.permute.xlu0 %698
      %v700 = vsel %vm269, %v693, %v695
      %v701 = vsel %vm269, %v697, %v699
      %706 = vrot.lane.b32.xlu0 %v682, 124
      %v707 = vpop.permute.xlu0 %706
      %708 = vrot.lane.b32.xlu0 %v683, 124
      %v709 = vpop.permute.xlu0 %708
      %710 = vrot.lane.b32.xlu0 %v684, 124
      %v711 = vpop.permute.xlu0 %710
      %712 = vrot.lane.b32.xlu0 %v685, 124
      %v713 = vpop.permute.xlu0 %712
      %v714 = vsel %vm472, %v707, %v709
      %v715 = vsel %vm472, %v711, %v713
      %721 = vset.pattern.permute.xlu0 127
      %722 = vperm.xlu0 %721, %v686
      %v723 = vpop.permute.xlu0 %722
      %726 = vset.pattern.permute.xlu0 127
      %727 = vperm.xlu0 %726, %v687
      %v728 = vpop.permute.xlu0 %727
      %vm730 = vcmask 392192
      %v731 = vsel %vm730, %v686, 0
      %v733 = vsel %vm730, %v687, 0
      %735 = vmatprep.subr.mxu0 %v683
      %736 = vmatpush1.msra.mxu0 %v682
      %737 = vmatprep.subr.mxu0 %v685
      %738 = vmatpush1.msra.mxu0 %v684
      %739 = vmatprep.subr.mxu0 %v695
      %740 = vmatpush1.msra.mxu0 %v700
      %741 = vmatprep.subr.mxu0 %v699
      %742 = vmatpush1.msra.mxu0 %v701
      %743 = vmatprep.subr.mxu0 %v709
      %744 = vmatpush1.msra.mxu0 %v714
      %745 = vmatprep.subr.mxu0 %v713
      %746 = vmatpush1.msra.mxu0 %v715
      %747 = vmatprep.subr.mxu0 0.0
      %748 = vmatpush1.msra.mxu0 0.0
      %749 = vmatprep.subr.mxu0 0.0
      %750 = vmatpush1.msra.mxu0 0.0
      %751 = vmatprep.subr.mxu0 0.0
      %752 = vmatpush1.msra.mxu0 0.0
      %753 = vmatprep.subr.mxu0 0.0
      %754 = vmatpush1.msra.mxu0 0.0
      %755 = vmatprep.subr.mxu0 0.0
      %756 = vmatpush1.msra.mxu0 0.0
      %757 = vmatprep.subr.mxu0 0.0
      %758 = vmatpush1.msra.mxu0 0.0
      %759 = vmatprep.subr.mxu0 0.0
      %760 = vmatpush1.msra.mxu0 0.0
      %761 = vmatprep.subr.mxu0 0.0
      %762 = vmatpush1.msra.mxu0 0.0
      %763 = vmatprep.subr.mxu0 0.0
      %764 = vmatpush1.msra.mxu0 0.0
      %765 = vmatprep.subr.mxu0 0.0
      %766 = vmatpush1.msra.mxu0 0.0
      %767 = vmatprep.subr.mxu0 0.0
      %768 = vmatpush1.msra.mxu0 0.0
      %769 = vmatprep.subr.mxu0 0.0
      %770 = vmatpush1.msra.mxu0 0.0
      %771 = vmatprep.subr.mxu0 0.0
      %772 = vmatpush1.msra.mxu0 0.0
      %773 = vmatprep.subr.mxu0 0.0
      %774 = vmatpush1.msra.mxu0 0.0
      %775 = vmatprep.subr.mxu0 0.0
      %776 = vmatpush1.msra.mxu0 0.0
      %777 = vmatprep.subr.mxu0 0.0
      %778 = vmatpush1.msra.mxu0 0.0
      %779 = vmatprep.subr.mxu0 0.0
      %780 = vmatpush1.msra.mxu0 0.0
      %781 = vmatprep.subr.mxu0 0.0
      %782 = vmatpush1.msra.mxu0 0.0
      %783 = vmatprep.subr.mxu0 0.0
      %784 = vmatpush1.msra.mxu0 0.0
      %785 = vmatprep.subr.mxu0 0.0
      %786 = vmatpush1.msra.mxu0 0.0
      %787 = vmatprep.subr.mxu0 0.0
      %788 = vmatpush1.msra.mxu0 0.0
      %789 = vmatprep.subr.mxu0 0.0
      %790 = vmatpush1.msra.mxu0 0.0
      %791 = vmatprep.subr.mxu0 0.0
      %792 = vmatpush1.msra.mxu0 0.0
      %793 = vmatprep.subr.mxu0 0.0
      %794 = vmatpush1.msra.mxu0 0.0
      %795 = vmatprep.subr.mxu0 0.0
      %796 = vmatpush1.msra.mxu0 0.0
      %797 = vmatprep.subr.mxu0 0.0
      %798 = vmatpush1.msra.mxu0 0.0
      %799 = vmatprep.mubr.f32.mxu0 0.0
      %800 = vmatmul.mubr.f32.gmra.mrb[0].mxu0 %v731
      %v801 = vpop.f32.mrb[0].mxu0
      %v802 = vadd.f32 %v723, %v801
      %v803 = vpop.f32.mrb[0].mxu0
      %v804 = vadd.f32 %v723, %v803
      %805 = vmatprep.mubr.f32.mxu0 0.0
      %806 = vmatmul.mubr.f32.gmra.mrb[0].mxu0 %v733
      %v807 = vpop.f32.mrb[0].mxu0
      %v808 = vadd.f32 %v728, %v807
      %v809 = vpop.f32.mrb[0].mxu0
      %v810 = vadd.f32 %v728, %v809
      %811 = vdwg.mxu0
      %v812 = vmax.f32 %v802, 0.0
      %v813 = vmax.f32 %v804, 0.0
      %v814 = vmax.f32 %v808, 0.0
      %v815 = vmax.f32 %v810, 0.0
      %v816 = vld [vmem:[%s2 + $0x38] sm:$0xff]
      %v817 = vld [vmem:[%s2 + $0x40] sm:$0xff]
      %819 = vset.pattern.permute.xlu0 127
      %820 = vperm.xlu0 %819, %v816
      %v821 = vpop.permute.xlu0 %820
      %824 = vset.pattern.permute.xlu0 127
      %825 = vperm.xlu0 %824, %v817
      %v826 = vpop.permute.xlu0 %825
      %828 = vrot.lane.b32.xlu0 %v559, 120
      %v829 = vpop.permute.xlu0 %828
      %830 = vrot.lane.b32.xlu0 %v560, 120
      %v831 = vpop.permute.xlu0 %830
      %v832 = vsel %vm678, %v829, %v831
      %v835 = vsel %vm476, %v816, 0
      %v837 = vsel %vm476, %v817, 0
      %839 = vmatprep.subr.mxu0 %v831
      %840 = vmatpush1.msra.mxu0 %v832
      %841 = vmatprep.subr.mxu0 0.0
      %842 = vmatpush1.msra.mxu0 0.0
      %843 = vmatprep.subr.mxu0 0.0
      %844 = vmatpush1.msra.mxu0 0.0
      %845 = vmatprep.subr.mxu0 0.0
      %846 = vmatpush1.msra.mxu0 0.0
      %847 = vmatprep.subr.mxu0 0.0
      %848 = vmatpush1.msra.mxu0 0.0
      %849 = vmatprep.subr.mxu0 0.0
      %850 = vmatpush1.msra.mxu0 0.0
      %851 = vmatprep.subr.mxu0 0.0
      %852 = vmatpush1.msra.mxu0 0.0
      %853 = vmatprep.subr.mxu0 0.0
      %854 = vmatpush1.msra.mxu0 0.0
      %855 = vmatprep.subr.mxu0 0.0
      %856 = vmatpush1.msra.mxu0 0.0
      %857 = vmatprep.subr.mxu0 0.0
      %858 = vmatpush1.msra.mxu0 0.0
      %859 = vmatprep.subr.mxu0 0.0
      %860 = vmatpush1.msra.mxu0 0.0
      %861 = vmatprep.subr.mxu0 0.0
      %862 = vmatpush1.msra.mxu0 0.0
      %863 = vmatprep.subr.mxu0 0.0
      %864 = vmatpush1.msra.mxu0 0.0
      %865 = vmatprep.subr.mxu0 0.0
      %866 = vmatpush1.msra.mxu0 0.0
      %867 = vmatprep.subr.mxu0 0.0
      %868 = vmatpush1.msra.mxu0 0.0
      %869 = vmatprep.subr.mxu0 0.0
      %870 = vmatpush1.msra.mxu0 0.0
      %871 = vmatprep.subr.mxu0 0.0
      %872 = vmatpush1.msra.mxu0 0.0
      %873 = vmatprep.subr.mxu0 0.0
      %874 = vmatpush1.msra.mxu0 0.0
      %875 = vmatprep.subr.mxu0 0.0
      %876 = vmatpush1.msra.mxu0 0.0
      %877 = vmatprep.subr.mxu0 0.0
      %878 = vmatpush1.msra.mxu0 0.0
      %879 = vmatprep.subr.mxu0 0.0
      %880 = vmatpush1.msra.mxu0 0.0
      %881 = vmatprep.subr.mxu0 0.0
      %882 = vmatpush1.msra.mxu0 0.0
      %883 = vmatprep.subr.mxu0 0.0
      %884 = vmatpush1.msra.mxu0 0.0
      %885 = vmatprep.subr.mxu0 0.0
      %886 = vmatpush1.msra.mxu0 0.0
      %887 = vmatprep.subr.mxu0 0.0
      %888 = vmatpush1.msra.mxu0 0.0
      %889 = vmatprep.subr.mxu0 0.0
      %890 = vmatpush1.msra.mxu0 0.0
      %891 = vmatprep.subr.mxu0 0.0
      %892 = vmatpush1.msra.mxu0 0.0
      %893 = vmatprep.subr.mxu0 0.0
      %894 = vmatpush1.msra.mxu0 0.0
      %895 = vmatprep.subr.mxu0 0.0
      %896 = vmatpush1.msra.mxu0 0.0
      %897 = vmatprep.subr.mxu0 0.0
      %898 = vmatpush1.msra.mxu0 0.0
      %899 = vmatprep.subr.mxu0 0.0
      %900 = vmatpush1.msra.mxu0 0.0
      %901 = vmatprep.subr.mxu0 0.0
      %902 = vmatpush1.msra.mxu0 0.0
      %903 = vmatprep.mubr.f32.mxu0 0.0
      %904 = vmatmul.mubr.f32.gmra.mrb[0].mxu0 %v835
      %v905 = vpop.f32.mrb[0].mxu0
      %v906 = vadd.f32 %v821, %v905
      %v907 = vpop.f32.mrb[0].mxu0
      %v908 = vadd.f32 %v821, %v907
      %909 = vmatprep.mubr.f32.mxu0 0.0
      %910 = vmatmul.mubr.f32.gmra.mrb[0].mxu0 %v837
      %v911 = vpop.f32.mrb[0].mxu0
      %v912 = vadd.f32 %v826, %v911
      %v913 = vpop.f32.mrb[0].mxu0
      %v914 = vadd.f32 %v826, %v913
      %915 = vdwg.mxu0
      %v916 = vadd.f32 %v812, %v906
      %v917 = vadd.f32 %v813, %v908
      %v918 = vadd.f32 %v814, %v912
      %v919 = vadd.f32 %v815, %v914
      %920 = vrot.lane.b32.xlu0 %v252, 116
      %v921 = vpop.permute.xlu0 %920
      %922 = vrot.lane.b32.xlu0 %v253, 116
      %v923 = vpop.permute.xlu0 %922
      %vm924 = vcmask 949248
      %v925 = vsel %vm924, %v921, %v923
      %v928 = vmul.f32 %v916, %v925
      %v929 = vmul.f32 %v917, %v923
      %v930 = vmul.f32 %v918, %v925
      %v931 = vmul.f32 %v919, %v923
      %v932 = vld [vmem:[%s2 + $0x48] sm:$0xff]
      %v933 = vld [vmem:[%s2 + $0x50] sm:$0xff]
      %v934 = vld [vmem:[%s2 + $0x58] sm:$0xff]
      %939 = vrot.lane.b32.xlu0 %v928, 124
      %v940 = vpop.permute.xlu0 %939
      %941 = vrot.lane.b32.xlu0 %v929, 124
      %v942 = vpop.permute.xlu0 %941
      %943 = vrot.lane.b32.xlu0 %v930, 124
      %v944 = vpop.permute.xlu0 %943
      %945 = vrot.lane.b32.xlu0 %v931, 124
      %v946 = vpop.permute.xlu0 %945
      %v947 = vsel %vm472, %v940, %v942
      %v948 = vsel %vm472, %v944, %v946
      %953 = vrot.lane.b32.xlu0 %v928, 120
      %v954 = vpop.permute.xlu0 %953
      %955 = vrot.lane.b32.xlu0 %v929, 120
      %v956 = vpop.permute.xlu0 %955
      %957 = vrot.lane.b32.xlu0 %v930, 120
      %v958 = vpop.permute.xlu0 %957
      %959 = vrot.lane.b32.xlu0 %v931, 120
      %v960 = vpop.permute.xlu0 %959
      %v961 = vsel %vm678, %v954, %v956
      %v962 = vsel %vm678, %v958, %v960
      %968 = vset.pattern.permute.xlu0 127
      %969 = vperm.xlu0 %968, %v932
      %v970 = vpop.permute.xlu0 %969
      %973 = vset.pattern.permute.xlu0 127
      %974 = vperm.xlu0 %973, %v933
      %v975 = vpop.permute.xlu0 %974
      %978 = vset.pattern.permute.xlu0 127
      %979 = vperm.xlu0 %978, %v934
      %v980 = vpop.permute.xlu0 %979
      %v982 = vsel %vm730, %v932, 0
      %v984 = vsel %vm730, %v933, 0
      %v986 = vsel %vm730, %v934, 0
      %988 = vmatprep.subr.mxu0 %v929
      %989 = vmatpush1.msra.mxu0 %v928
      %990 = vmatprep.subr.mxu0 %v931
      %991 = vmatpush1.msra.mxu0 %v930
      %992 = vmatprep.subr.mxu0 %v942
      %993 = vmatpush1.msra.mxu0 %v947
      %994 = vmatprep.subr.mxu0 %v946
      %995 = vmatpush1.msra.mxu0 %v948
      %996 = vmatprep.subr.mxu0 %v956
      %997 = vmatpush1.msra.mxu0 %v961
      %998 = vmatprep.subr.mxu0 %v960
      %999 = vmatpush1.msra.mxu0 %v962
      %1000 = vmatprep.subr.mxu0 0.0
      %1001 = vmatpush1.msra.mxu0 0.0
      %1002 = vmatprep.subr.mxu0 0.0
      %1003 = vmatpush1.msra.mxu0 0.0
      %1004 = vmatprep.subr.mxu0 0.0
      %1005 = vmatpush1.msra.mxu0 0.0
      %1006 = vmatprep.subr.mxu0 0.0
      %1007 = vmatpush1.msra.mxu0 0.0
      %1008 = vmatprep.subr.mxu0 0.0
      %1009 = vmatpush1.msra.mxu0 0.0
      %1010 = vmatprep.subr.mxu0 0.0
      %1011 = vmatpush1.msra.mxu0 0.0
      %1012 = vmatprep.subr.mxu0 0.0
      %1013 = vmatpush1.msra.mxu0 0.0
      %1014 = vmatprep.subr.mxu0 0.0
      %1015 = vmatpush1.msra.mxu0 0.0
      %1016 = vmatprep.subr.mxu0 0.0
      %1017 = vmatpush1.msra.mxu0 0.0
      %1018 = vmatprep.subr.mxu0 0.0
      %1019 = vmatpush1.msra.mxu0 0.0
      %1020 = vmatprep.subr.mxu0 0.0
      %1021 = vmatpush1.msra.mxu0 0.0
      %1022 = vmatprep.subr.mxu0 0.0
      %1023 = vmatpush1.msra.mxu0 0.0
      %1024 = vmatprep.subr.mxu0 0.0
      %1025 = vmatpush1.msra.mxu0 0.0
      %1026 = vmatprep.subr.mxu0 0.0
      %1027 = vmatpush1.msra.mxu0 0.0
      %1028 = vmatprep.subr.mxu0 0.0
      %1029 = vmatpush1.msra.mxu0 0.0
      %1030 = vmatprep.subr.mxu0 0.0
      %1031 = vmatpush1.msra.mxu0 0.0
      %1032 = vmatprep.subr.mxu0 0.0
      %1033 = vmatpush1.msra.mxu0 0.0
      %1034 = vmatprep.subr.mxu0 0.0
      %1035 = vmatpush1.msra.mxu0 0.0
      %1036 = vmatprep.subr.mxu0 0.0
      %1037 = vmatpush1.msra.mxu0 0.0
      %1038 = vmatprep.subr.mxu0 0.0
      %1039 = vmatpush1.msra.mxu0 0.0
      %1040 = vmatprep.subr.mxu0 0.0
      %1041 = vmatpush1.msra.mxu0 0.0
      %1042 = vmatprep.subr.mxu0 0.0
      %1043 = vmatpush1.msra.mxu0 0.0
      %1044 = vmatprep.subr.mxu0 0.0
      %1045 = vmatpush1.msra.mxu0 0.0
      %1046 = vmatprep.subr.mxu0 0.0
      %1047 = vmatpush1.msra.mxu0 0.0
      %1048 = vmatprep.subr.mxu0 0.0
      %1049 = vmatpush1.msra.mxu0 0.0
      %1050 = vmatprep.subr.mxu0 0.0
      %1051 = vmatpush1.msra.mxu0 0.0
      %1052 = vmatprep.mubr.f32.mxu0 0.0
      %1053 = vmatmul.mubr.f32.gmra.mrb[0].mxu0 %v982
      %v1054 = vpop.f32.mrb[0].mxu0
      %v1055 = vadd.f32 %v970, %v1054
      %v1056 = vpop.f32.mrb[0].mxu0
      %v1057 = vadd.f32 %v970, %v1056
      %1058 = vmatprep.mubr.f32.mxu0 0.0
      %1059 = vmatmul.mubr.f32.gmra.mrb[0].mxu0 %v984
      %v1060 = vpop.f32.mrb[0].mxu0
      %v1061 = vadd.f32 %v975, %v1060
      %v1062 = vpop.f32.mrb[0].mxu0
      %v1063 = vadd.f32 %v975, %v1062
      %1064 = vmatprep.mubr.f32.mxu0 0.0
      %1065 = vmatmul.mubr.f32.gmra.mrb[0].mxu0 %v986
      %v1066 = vpop.f32.mrb[0].mxu0
      %v1067 = vadd.f32 %v980, %v1066
      %v1068 = vpop.f32.mrb[0].mxu0
      %v1069 = vadd.f32 %v980, %v1068
      %1070 = vdwg.mxu0
      %v1071 = vmax.f32 %v1055, 0.0
      %v1072 = vmax.f32 %v1057, 0.0
      %v1073 = vmax.f32 %v1061, 0.0
      %v1074 = vmax.f32 %v1063, 0.0
      %v1075 = vmax.f32 %v1067, 0.0
      %v1076 = vmax.f32 %v1069, 0.0
      %1077 = vrot.lane.b32.xlu0 %v252, 108
      %v1078 = vpop.permute.xlu0 %1077
      %1079 = vrot.lane.b32.xlu0 %v253, 108
      %v1080 = vpop.permute.xlu0 %1079
      %vm1081 = vcmask 883712
      %v1082 = vsel %vm1081, %v1078, %v1080
      %v1085 = vmul.f32 %v1071, %v1082
      %v1086 = vmul.f32 %v1072, %v1080
      %v1087 = vmul.f32 %v1073, %v1082
      %v1088 = vmul.f32 %v1074, %v1080
      %v1089 = vmul.f32 %v1075, %v1082
      %v1090 = vmul.f32 %v1076, %v1080
      %v1091 = vld [vmem:[%s2 + $0x60] sm:$0xff]
      %v1092 = vld [vmem:[%s2 + $0x68] sm:$0xff]
      %v1093 = vld [vmem:[%s2 + $0x70] sm:$0xff]
      %1100 = vrot.lane.b32.xlu0 %v1085, 124
      %v1101 = vpop.permute.xlu0 %1100
      %1102 = vrot.lane.b32.xlu0 %v1086, 124
      %v1103 = vpop.permute.xlu0 %1102
      %1104 = vrot.lane.b32.xlu0 %v1087, 124
      %v1105 = vpop.permute.xlu0 %1104
      %1106 = vrot.lane.b32.xlu0 %v1088, 124
      %v1107 = vpop.permute.xlu0 %1106
      %1108 = vrot.lane.b32.xlu0 %v1089, 124
      %v1109 = vpop.permute.xlu0 %1108
      %1110 = vrot.lane.b32.xlu0 %v1090, 124
      %v1111 = vpop.permute.xlu0 %1110
      %v1112 = vsel %vm472, %v1101, %v1103
      %v1113 = vsel %vm472, %v1105, %v1107
      %v1114 = vsel %vm472, %v1109, %v1111
      %1121 = vrot.lane.b32.xlu0 %v1085, 120
      %v1122 = vpop.permute.xlu0 %1121
      %1123 = vrot.lane.b32.xlu0 %v1086, 120
      %v1124 = vpop.permute.xlu0 %1123
      %1125 = vrot.lane.b32.xlu0 %v1087, 120
      %v1126 = vpop.permute.xlu0 %1125
      %1127 = vrot.lane.b32.xlu0 %v1088, 120
      %v1128 = vpop.permute.xlu0 %1127
      %1129 = vrot.lane.b32.xlu0 %v1089, 120
      %v1130 = vpop.permute.xlu0 %1129
      %1131 = vrot.lane.b32.xlu0 %v1090, 120
      %v1132 = vpop.permute.xlu0 %1131
      %v1133 = vsel %vm678, %v1122, %v1124
      %v1134 = vsel %vm678, %v1126, %v1128
      %v1135 = vsel %vm678, %v1130, %v1132
      %1143 = vset.pattern.permute.xlu0 127
      %1144 = vperm.xlu0 %1143, %v1091
      %v1145 = vpop.permute.xlu0 %1144
      %1148 = vset.pattern.permute.xlu0 127
      %1149 = vperm.xlu0 %1148, %v1092
      %v1150 = vpop.permute.xlu0 %1149
      %1153 = vset.pattern.permute.xlu0 127
      %1154 = vperm.xlu0 %1153, %v1093
      %v1155 = vpop.permute.xlu0 %1154
      %vm1157 = vcmask 588800
      %v1158 = vsel %vm1157, %v1091, 0
      %v1160 = vsel %vm1157, %v1092, 0
      %v1162 = vsel %vm1157, %v1093, 0
      %1164 = vmatprep.subr.mxu0 %v1086
      %1165 = vmatpush1.msra.mxu0 %v1085
      %1166 = vmatprep.subr.mxu0 %v1088
      %1167 = vmatpush1.msra.mxu0 %v1087
      %1168 = vmatprep.subr.mxu0 %v1090
      %1169 = vmatpush1.msra.mxu0 %v1089
      %1170 = vmatprep.subr.mxu0 %v1103
      %1171 = vmatpush1.msra.mxu0 %v1112
      %1172 = vmatprep.subr.mxu0 %v1107
      %1173 = vmatpush1.msra.mxu0 %v1113
      %1174 = vmatprep.subr.mxu0 %v1111
      %1175 = vmatpush1.msra.mxu0 %v1114
      %1176 = vmatprep.subr.mxu0 %v1124
      %1177 = vmatpush1.msra.mxu0 %v1133
      %1178 = vmatprep.subr.mxu0 %v1128
      %1179 = vmatpush1.msra.mxu0 %v1134
      %1180 = vmatprep.subr.mxu0 %v1132
      %1181 = vmatpush1.msra.mxu0 %v1135
      %1182 = vmatprep.subr.mxu0 0.0
      %1183 = vmatpush1.msra.mxu0 0.0
      %1184 = vmatprep.subr.mxu0 0.0
      %1185 = vmatpush1.msra.mxu0 0.0
      %1186 = vmatprep.subr.mxu0 0.0
      %1187 = vmatpush1.msra.mxu0 0.0
      %1188 = vmatprep.subr.mxu0 0.0
      %1189 = vmatpush1.msra.mxu0 0.0
      %1190 = vmatprep.subr.mxu0 0.0
      %1191 = vmatpush1.msra.mxu0 0.0
      %1192 = vmatprep.subr.mxu0 0.0
      %1193 = vmatpush1.msra.mxu0 0.0
      %1194 = vmatprep.subr.mxu0 0.0
      %1195 = vmatpush1.msra.mxu0 0.0
      %1196 = vmatprep.subr.mxu0 0.0
      %1197 = vmatpush1.msra.mxu0 0.0
      %1198 = vmatprep.subr.mxu0 0.0
      %1199 = vmatpush1.msra.mxu0 0.0
      %1200 = vmatprep.subr.mxu0 0.0
      %1201 = vmatpush1.msra.mxu0 0.0
      %1202 = vmatprep.subr.mxu0 0.0
      %1203 = vmatpush1.msra.mxu0 0.0
      %1204 = vmatprep.subr.mxu0 0.0
      %1205 = vmatpush1.msra.mxu0 0.0
      %1206 = vmatprep.subr.mxu0 0.0
      %1207 = vmatpush1.msra.mxu0 0.0
      %1208 = vmatprep.subr.mxu0 0.0
      %1209 = vmatpush1.msra.mxu0 0.0
      %1210 = vmatprep.subr.mxu0 0.0
      %1211 = vmatpush1.msra.mxu0 0.0
      %1212 = vmatprep.subr.mxu0 0.0
      %1213 = vmatpush1.msra.mxu0 0.0
      %1214 = vmatprep.subr.mxu0 0.0
      %1215 = vmatpush1.msra.mxu0 0.0
      %1216 = vmatprep.subr.mxu0 0.0
      %1217 = vmatpush1.msra.mxu0 0.0
      %1218 = vmatprep.subr.mxu0 0.0
      %1219 = vmatpush1.msra.mxu0 0.0
      %1220 = vmatprep.subr.mxu0 0.0
      %1221 = vmatpush1.msra.mxu0 0.0
      %1222 = vmatprep.subr.mxu0 0.0
      %1223 = vmatpush1.msra.mxu0 0.0
      %1224 = vmatprep.subr.mxu0 0.0
      %1225 = vmatpush1.msra.mxu0 0.0
      %1226 = vmatprep.subr.mxu0 0.0
      %1227 = vmatpush1.msra.mxu0 0.0
      %1228 = vmatprep.mubr.f32.mxu0 0.0
      %1229 = vmatmul.mubr.f32.gmra.mrb[0].mxu0 %v1158
      %v1230 = vpop.f32.mrb[0].mxu0
      %v1231 = vadd.f32 %v1145, %v1230
      %v1232 = vpop.f32.mrb[0].mxu0
      %v1233 = vadd.f32 %v1145, %v1232
      %1234 = vmatprep.mubr.f32.mxu0 0.0
      %1235 = vmatmul.mubr.f32.gmra.mrb[0].mxu0 %v1160
      %v1236 = vpop.f32.mrb[0].mxu0
      %v1237 = vadd.f32 %v1150, %v1236
      %v1238 = vpop.f32.mrb[0].mxu0
      %v1239 = vadd.f32 %v1150, %v1238
      %1240 = vmatprep.mubr.f32.mxu0 0.0
      %1241 = vmatmul.mubr.f32.gmra.mrb[0].mxu0 %v1162
      %v1242 = vpop.f32.mrb[0].mxu0
      %v1243 = vadd.f32 %v1155, %v1242
      %v1244 = vpop.f32.mrb[0].mxu0
      %v1245 = vadd.f32 %v1155, %v1244
      %1246 = vdwg.mxu0
      %v1247 = vmax.f32 %v1231, 0.0
      %v1248 = vmax.f32 %v1233, 0.0
      %v1249 = vmax.f32 %v1237, 0.0
      %v1250 = vmax.f32 %v1239, 0.0
      %v1251 = vmax.f32 %v1243, 0.0
      %v1252 = vmax.f32 %v1245, 0.0
      %v1253 = vld [vmem:[%s2 + $0x78] sm:$0xff]
      %v1254 = vld [vmem:[%s2 + $0x80] sm:$0xff]
      %v1255 = vld [vmem:[%s2 + $0x88] sm:$0xff]
      %1257 = vset.pattern.permute.xlu0 127
      %1258 = vperm.xlu0 %1257, %v1253
      %v1259 = vpop.permute.xlu0 %1258
      %1262 = vset.pattern.permute.xlu0 127
      %1263 = vperm.xlu0 %1262, %v1254
      %v1264 = vpop.permute.xlu0 %1263
      %1267 = vset.pattern.permute.xlu0 127
      %1268 = vperm.xlu0 %1267, %v1255
      %v1269 = vpop.permute.xlu0 %1268
      %1271 = vrot.lane.b32.xlu0 %v928, 112
      %v1272 = vpop.permute.xlu0 %1271
      %1273 = vrot.lane.b32.xlu0 %v929, 112
      %v1274 = vpop.permute.xlu0 %1273
      %1275 = vrot.lane.b32.xlu0 %v930, 112
      %v1276 = vpop.permute.xlu0 %1275
      %1277 = vrot.lane.b32.xlu0 %v931, 112
      %v1278 = vpop.permute.xlu0 %1277
      %vm1279 = vcmask 916480
      %v1280 = vsel %vm1279, %v1272, %v1274
      %v1281 = vsel %vm1279, %v1276, %v1278
      %vm1286 = vcmask 130048
      %v1287 = vsel %vm1286, %v1253, 0
      %v1289 = vsel %vm1286, %v1254, 0
      %v1291 = vsel %vm1286, %v1255, 0
      %1293 = vmatprep.subr.mxu0 %v1274
      %1294 = vmatpush1.msra.mxu0 %v1280
      %1295 = vmatprep.subr.mxu0 %v1278
      %1296 = vmatpush1.msra.mxu0 %v1281
      %1297 = vmatprep.subr.mxu0 0.0
      %1298 = vmatpush1.msra.mxu0 0.0
      %1299 = vmatprep.subr.mxu0 0.0
      %1300 = vmatpush1.msra.mxu0 0.0
      %1301 = vmatprep.subr.mxu0 0.0
      %1302 = vmatpush1.msra.mxu0 0.0
      %1303 = vmatprep.subr.mxu0 0.0
      %1304 = vmatpush1.msra.mxu0 0.0
      %1305 = vmatprep.subr.mxu0 0.0
      %1306 = vmatpush1.msra.mxu0 0.0
      %1307 = vmatprep.subr.mxu0 0.0
      %1308 = vmatpush1.msra.mxu0 0.0
      %1309 = vmatprep.subr.mxu0 0.0
      %1310 = vmatpush1.msra.mxu0 0.0
      %1311 = vmatprep.subr.mxu0 0.0
      %1312 = vmatpush1.msra.mxu0 0.0
      %1313 = vmatprep.subr.mxu0 0.0
      %1314 = vmatpush1.msra.mxu0 0.0
      %1315 = vmatprep.subr.mxu0 0.0
      %1316 = vmatpush1.msra.mxu0 0.0
      %1317 = vmatprep.subr.mxu0 0.0
      %1318 = vmatpush1.msra.mxu0 0.0
      %1319 = vmatprep.subr.mxu0 0.0
      %1320 = vmatpush1.msra.mxu0 0.0
      %1321 = vmatprep.subr.mxu0 0.0
      %1322 = vmatpush1.msra.mxu0 0.0
      %1323 = vmatprep.subr.mxu0 0.0
      %1324 = vmatpush1.msra.mxu0 0.0
      %1325 = vmatprep.subr.mxu0 0.0
      %1326 = vmatpush1.msra.mxu0 0.0
      %1327 = vmatprep.subr.mxu0 0.0
      %1328 = vmatpush1.msra.mxu0 0.0
      %1329 = vmatprep.subr.mxu0 0.0
      %1330 = vmatpush1.msra.mxu0 0.0
      %1331 = vmatprep.subr.mxu0 0.0
      %1332 = vmatpush1.msra.mxu0 0.0
      %1333 = vmatprep.subr.mxu0 0.0
      %1334 = vmatpush1.msra.mxu0 0.0
      %1335 = vmatprep.subr.mxu0 0.0
      %1336 = vmatpush1.msra.mxu0 0.0
      %1337 = vmatprep.subr.mxu0 0.0
      %1338 = vmatpush1.msra.mxu0 0.0
      %1339 = vmatprep.subr.mxu0 0.0
      %1340 = vmatpush1.msra.mxu0 0.0
      %1341 = vmatprep.subr.mxu0 0.0
      %1342 = vmatpush1.msra.mxu0 0.0
      %1343 = vmatprep.subr.mxu0 0.0
      %1344 = vmatpush1.msra.mxu0 0.0
      %1345 = vmatprep.subr.mxu0 0.0
      %1346 = vmatpush1.msra.mxu0 0.0
      %1347 = vmatprep.subr.mxu0 0.0
      %1348 = vmatpush1.msra.mxu0 0.0
      %1349 = vmatprep.subr.mxu0 0.0
      %1350 = vmatpush1.msra.mxu0 0.0
      %1351 = vmatprep.subr.mxu0 0.0
      %1352 = vmatpush1.msra.mxu0 0.0
      %1353 = vmatprep.subr.mxu0 0.0
      %1354 = vmatpush1.msra.mxu0 0.0
      %1355 = vmatprep.subr.mxu0 0.0
      %1356 = vmatpush1.msra.mxu0 0.0
      %1357 = vmatprep.mubr.f32.mxu0 0.0
      %1358 = vmatmul.mubr.f32.gmra.mrb[0].mxu0 %v1287
      %v1359 = vpop.f32.mrb[0].mxu0
      %v1360 = vadd.f32 %v1259, %v1359
      %v1361 = vpop.f32.mrb[0].mxu0
      %v1362 = vadd.f32 %v1259, %v1361
      %1363 = vmatprep.mubr.f32.mxu0 0.0
      %1364 = vmatmul.mubr.f32.gmra.mrb[0].mxu0 %v1289
      %v1365 = vpop.f32.mrb[0].mxu0
      %v1366 = vadd.f32 %v1264, %v1365
      %v1367 = vpop.f32.mrb[0].mxu0
      %v1368 = vadd.f32 %v1264, %v1367
      %1369 = vmatprep.mubr.f32.mxu0 0.0
      %1370 = vmatmul.mubr.f32.gmra.mrb[0].mxu0 %v1291
      %v1371 = vpop.f32.mrb[0].mxu0
      %v1372 = vadd.f32 %v1269, %v1371
      %v1373 = vpop.f32.mrb[0].mxu0
      %v1374 = vadd.f32 %v1269, %v1373
      %1375 = vdwg.mxu0
      %v1376 = vadd.f32 %v1247, %v1360
      %v1377 = vadd.f32 %v1248, %v1362
      %v1378 = vadd.f32 %v1249, %v1366
      %v1379 = vadd.f32 %v1250, %v1368
      %v1380 = vadd.f32 %v1251, %v1372
      %v1381 = vadd.f32 %v1252, %v1374
      %v1382 = vld [vmem:[%s2 + $0x90] sm:$0x7]
      %1384 = vset.pattern.permute.xlu0 127
      %1385 = vperm.xlu0 %1384, %v1382
      %v1386 = vpop.permute.xlu0 %1385
      %1394 = vrot.lane.b32.xlu0 %v1376, 28
      %v1395 = vpop.permute.xlu0 %1394
      %1396 = vrot.lane.b32.xlu0 %v1377, 28
      %v1397 = vpop.permute.xlu0 %1396
      %1398 = vrot.lane.b32.xlu0 %v1378, 28
      %v1399 = vpop.permute.xlu0 %1398
      %1400 = vrot.lane.b32.xlu0 %v1379, 28
      %v1401 = vpop.permute.xlu0 %1400
      %1402 = vrot.lane.b32.xlu0 %v1380, 28
      %v1403 = vpop.permute.xlu0 %1402
      %1404 = vrot.lane.b32.xlu0 %v1381, 28
      %v1405 = vpop.permute.xlu0 %1404
      %vm1406 = vcmask 228352
      %v1407 = vsel %vm1406, %v1395, %v1397
      %v1408 = vsel %vm1406, %v1399, %v1401
      %v1409 = vsel %vm1406, %v1403, %v1405
      %v1413 = vsel %vm278, %v1382, 0
      %1415 = vmatprep.subr.mxu0 0.0
      %1416 = vmatpush1.msra.mxu0 %v1407
      %1417 = vmatprep.subr.mxu0 0.0
      %1418 = vmatpush1.msra.mxu0 %v1408
      %1419 = vmatprep.subr.mxu0 0.0
      %1420 = vmatpush1.msra.mxu0 %v1409
      %1421 = vmatprep.subr.mxu0 0.0
      %1422 = vmatpush1.msra.mxu0 0.0
      %1423 = vmatprep.subr.mxu0 0.0
      %1424 = vmatpush1.msra.mxu0 0.0
      %1425 = vmatprep.subr.mxu0 0.0
      %1426 = vmatpush1.msra.mxu0 0.0
      %1427 = vmatprep.subr.mxu0 0.0
      %1428 = vmatpush1.msra.mxu0 0.0
      %1429 = vmatprep.subr.mxu0 0.0
      %1430 = vmatpush1.msra.mxu0 0.0
      %1431 = vmatprep.subr.mxu0 0.0
      %1432 = vmatpush1.msra.mxu0 0.0
      %1433 = vmatprep.subr.mxu0 0.0
      %1434 = vmatpush1.msra.mxu0 0.0
      %1435 = vmatprep.subr.mxu0 0.0
      %1436 = vmatpush1.msra.mxu0 0.0
      %1437 = vmatprep.subr.mxu0 0.0
      %1438 = vmatpush1.msra.mxu0 0.0
      %1439 = vmatprep.subr.mxu0 0.0
      %1440 = vmatpush1.msra.mxu0 0.0
      %1441 = vmatprep.subr.mxu0 0.0
      %1442 = vmatpush1.msra.mxu0 0.0
      %1443 = vmatprep.subr.mxu0 0.0
      %1444 = vmatpush1.msra.mxu0 0.0
      %1445 = vmatprep.subr.mxu0 0.0
      %1446 = vmatpush1.msra.mxu0 0.0
      %1447 = vmatprep.subr.mxu0 0.0
      %1448 = vmatpush1.msra.mxu0 0.0
      %1449 = vmatprep.subr.mxu0 0.0
      %1450 = vmatpush1.msra.mxu0 0.0
      %1451 = vmatprep.subr.mxu0 0.0
      %1452 = vmatpush1.msra.mxu0 0.0
      %1453 = vmatprep.subr.mxu0 0.0
      %1454 = vmatpush1.msra.mxu0 0.0
      %1455 = vmatprep.subr.mxu0 0.0
      %1456 = vmatpush1.msra.mxu0 0.0
      %1457 = vmatprep.subr.mxu0 0.0
      %1458 = vmatpush1.msra.mxu0 0.0
      %1459 = vmatprep.subr.mxu0 0.0
      %1460 = vmatpush1.msra.mxu0 0.0
      %1461 = vmatprep.subr.mxu0 0.0
      %1462 = vmatpush1.msra.mxu0 0.0
      %1463 = vmatprep.subr.mxu0 0.0
      %1464 = vmatpush1.msra.mxu0 0.0
      %1465 = vmatprep.subr.mxu0 0.0
      %1466 = vmatpush1.msra.mxu0 0.0
      %1467 = vmatprep.subr.mxu0 0.0
      %1468 = vmatpush1.msra.mxu0 0.0
      %1469 = vmatprep.subr.mxu0 0.0
      %1470 = vmatpush1.msra.mxu0 0.0
      %1471 = vmatprep.subr.mxu0 0.0
      %1472 = vmatpush1.msra.mxu0 0.0
      %1473 = vmatprep.subr.mxu0 0.0
      %1474 = vmatpush1.msra.mxu0 0.0
      %1475 = vmatprep.subr.mxu0 0.0
      %1476 = vmatpush1.msra.mxu0 0.0
      %1477 = vmatprep.subr.mxu0 0.0
      %1478 = vmatpush1.msra.mxu0 0.0
      %1479 = vmatprep.mubr.f32.mxu0 0.0
      %1480 = vmatmul.mubr.f32.gmra.mrb[0].mxu0 %v1413
      %v1481 = vpop.f32.mrb[0].mxu0
      %v1482 = vadd.f32 %v1386, %v1481
      %v1483 = vpop.f32.mrb[0].mxu0
      %1484 = vdwg.mxu0
      %1485 = vst [vmem:[%s237] sm:$0x7] %v1482
      %p1486 = scmp.lt.s32.totalorder %s18, 1
      %s1487 = scalar_select %p1486, %s18, 1
      %p1488 = scmp.lt.s32.totalorder %s19, 0
      %s1489 = scalar_select %p1488, %s19, 0
      %s1490 = sadd.s32 %s1489, %s1487
      %s1491 = smul.addr %s1490, 4
      %s1492 = scalar_lea.vmem %s3, %s1491
      // Predicated region
      $region33: #{_lambda_.1} parent=31 // pred_check
        %p1493 = pneg %p125
      $region34: #{_lambda_.1} parent=31 // pred_check_branch
        %1495 = sbr.rel (%p1493) target = $region36
      $region35: #{_lambda_.1} parent=31 // pred_region
        _
      $region36: #{_lambda_.1} parent=31 // pred_fallthru
        _
    $region32: #{_lambda_.1} parent=5 // pred_fallthru
      _
    %p1496 = scmp.le.s32.totalorder 2, %s9
    // Predicated region
    $region37: #{_lambda_.1} parent=5 // pred_check
      %p1497 = pneg %p1496
    $region38: #{_lambda_.1} parent=5 // pred_check_branch
      %1499 = sbr.rel (%p1497) target = $region40
    $region39: #{_lambda_.1} parent=5 // pred_region
      %s1500 = ssub.s32 %s9, 2
      // Predicated region
      $region41: #{_lambda_.1} parent=39 // pred_check
        %p1501 = pneg %p131
      $region42: #{_lambda_.1} parent=39 // pred_check_branch
        %1503 = sbr.rel (%p1501) target = $region44
      $region43: #{_lambda_.1} parent=39 // pred_region
        %p1504 = scmp.lt.s32.totalorder %s20, 1
        %s1505 = scalar_select %p1504, %s20, 1
        %p1506 = scmp.lt.s32.totalorder %s21, 0
        %s1507 = scalar_select %p1506, %s21, 0
        %s1508 = sadd.s32 %s1507, %s1505
        %s1509 = smul.addr %s1508, 4
        %s1510 = scalar_lea.vmem %s3, %s1509
      $region44: #{_lambda_.1} parent=39 // pred_fallthru
        _
    $region40: #{_lambda_.1} parent=5 // pred_fallthru
      _
  $region6: #{_lambda_.1} parent=0 // loop_footer
    %s13 = sadd.s32 1, %s9
  $region7: #{_lambda_.1} parent=0 // loop_footer_branch
    %8 = sbr.rel target = $region3
  $region8: #{_lambda_.1} parent=0 // loop_exit
    _

</llo_original>
